<compile_context>
chip_gen: v5e
topology: v5e:2x2
jax: 0.10.0
libtpu: 0.0.40
codegen_flags: <defaults>
</compile_context>

<pallas_src>
import functools
import math

import jax
import jax.numpy as jnp
import numpy as np
from jax.experimental import pallas as pl
from jax.experimental.pallas import tpu as pltpu


def lambda_init_fn(depth: int) -> float:
    return 0.8 - 0.6 * math.exp(-0.3 * depth)


def _layer_norm(x, gamma, beta, eps=1e-5):
    mean = jnp.mean(x, axis=-1, keepdims=True)
    var = jnp.mean((x - mean) ** 2, axis=-1, keepdims=True)
    return (x - mean) * jax.lax.rsqrt(var + eps) * gamma + beta


def _pick_q_block(T: int) -> int:
    """Largest query tile <= 256 that divides T (and respects the sublane-8 rule)."""
    if T <= 256:
        return T
    for cand in (256, 128, 64, 32, 16, 8):
        if T % cand == 0:
            return cand
    return T


@functools.lru_cache(maxsize=None)
def make_diff_transformer_layer_call(d_model, d_internal, num_heads, hidden_size,
                                     seq_len, batch, *, q_block=None,
                                     return_attention_maps=True):
    """Builds the pallas_call for one DiffTransformerLayer forward."""
    T, D, Di, H, Hid = seq_len, d_model, d_internal, num_heads, hidden_size
    Tq = q_block or _pick_q_block(T)
    assert T % Tq == 0 and (Tq == T or Tq % 8 == 0), "bad query tile"
    nq = T // Tq
    KVw = 3 * H * Di           # fused K/V projection width: per head [K(Di) | V(2Di)]
    Qw = H * Di                # fused Q projection width
    CATw = 2 * H * Di          # concatenated (normalized) head-output width

    def kernel(coef_ref, x_ref, wq_ref, bq_ref, wkv_ref, bkv_ref,
               lnh_g_ref, lnh_b_ref, wo_ref, bo_ref, ln1_g_ref, ln1_b_ref,
               w1_ref, b1_ref, w2_ref, b2_ref, ln2_g_ref, ln2_b_ref,
               out_ref, *rest):
        if return_attention_maps:
            attn_ref, kv_ref, q_ref, heads_ref = rest
        else:
            kv_ref, q_ref, heads_ref = rest

        qi = pl.program_id(1)
        row0 = pl.multiple_of(qi * Tq, Tq)
        coef = coef_ref[0, 0]                      # (1 - lambda_current), SMEM scalar

        # Fused K/V projection for the full sequence, computed once per batch element
        # (the q-tile axis is "arbitrary", i.e. sequential, so the scratch is reusable).
        @pl.when(qi == 0)
        def _():
            kv_ref[...] = (
                jnp.dot(x_ref[0], wkv_ref[...], preferred_element_type=jnp.float32)
                + bkv_ref[...])

        x_tile = x_ref[0, pl.ds(row0, Tq), :]                      # (Tq, D)
        # Fused Q projection for this query tile only (1/sqrt(D) folded into wq/bq).
        q_ref[...] = (jnp.dot(x_tile, wq_ref[...],
                              preferred_element_type=jnp.float32) + bq_ref[...])

        lnh_g = lnh_g_ref[...]
        lnh_b = lnh_b_ref[...]
        for h in range(H):                         # static, small head loop
            q = q_ref[:, pl.ds(h * Di, Di)]                        # (Tq, Di), pre-scaled
            k = kv_ref[:, pl.ds(h * 3 * Di, Di)]                   # (T, Di)
            v = kv_ref[:, pl.ds(h * 3 * Di + Di, 2 * Di)]          # (T, 2*Di)

            # Scores: contract last dims directly (no explicit k.T transpose).
            s = jax.lax.dot_general(q, k,
                                    dimension_numbers=(((1,), (1,)), ((), ())),
                                    preferred_element_type=jnp.float32)   # (Tq, T)

            # NOTE: in the reference PyTorch code Q2/K2 are produced by WQ1/WK1, so
            # A2 == A1 exactly and A = A1 - lambda*A2 == (1 - lambda) * softmax(s).
            m = jnp.max(s, axis=-1, keepdims=True)
            e = jnp.exp(s - m)
            inv = coef / jnp.sum(e, axis=-1, keepdims=True)        # (Tq, 1) only
            a = e * inv

            if return_attention_maps:
                attn_ref[h, 0, :, :] = a

            afinal = jnp.dot(a, v, preferred_element_type=jnp.float32)   # (Tq, 2*Di)
            # (1 - lambda_init) head scale is folded into WO at param-prep time.
            heads_ref[:, pl.ds(h * 2 * Di, 2 * Di)] = _layer_norm(afinal, lnh_g, lnh_b)

        proj = jnp.dot(heads_ref[...], wo_ref[...],
                       preferred_element_type=jnp.float32) + bo_ref[...]
        r1 = _layer_norm(x_tile + proj, ln1_g_ref[...], ln1_b_ref[...])
        hid = jnp.maximum(
            jnp.dot(r1, w1_ref[...], preferred_element_type=jnp.float32) + b1_ref[...],
            0.0)
        ff = jnp.dot(hid, w2_ref[...], preferred_element_type=jnp.float32) + b2_ref[...]
        out_ref[0] = _layer_norm(r1 + ff, ln2_g_ref[...], ln2_b_ref[...])

    def full(shape):
        nd = len(shape)
        return pl.BlockSpec(shape, lambda b, q, _nd=nd: (0,) * _nd)

    in_specs = [
        pl.BlockSpec(memory_space=pltpu.MemorySpace.SMEM),     # (1,1)  1 - lambda_current
        pl.BlockSpec((1, T, D), lambda b, q: (b, 0, 0)),       # input_vecs (full seq)
        full((D, Qw)), full((1, Qw)),                          # fused Q weight / bias
        full((D, KVw)), full((1, KVw)),                        # fused K/V weight / bias
        full((1, 2 * Di)), full((1, 2 * Di)),                  # per-head LayerNorm g/b
        full((CATw, D)), full((1, D)),                         # WO (pre-scaled), bO
        full((1, D)), full((1, D)),                            # layer_norm1 gamma/beta
        full((D, Hid)), full((1, Hid)),                        # FFLinear1
        full((Hid, D)), full((1, D)),                          # FFLinear2
        full((1, D)), full((1, D)),                            # layer_norm2 gamma/beta
    ]
    out_specs = [pl.BlockSpec((1, Tq, D), lambda b, q: (b, q, 0))]
    out_shape = [jax.ShapeDtypeStruct((batch, T, D), jnp.float32)]
    if return_attention_maps:
        out_specs.append(pl.BlockSpec((H, 1, Tq, T), lambda b, q: (0, b, q, 0)))
        out_shape.append(jax.ShapeDtypeStruct((H, batch, T, T), jnp.float32))

    scratch_shapes = [
        pltpu.VMEM((T, KVw), jnp.float32),       # cached fused K/V for the sequence
        pltpu.VMEM((Tq, Qw), jnp.float32),       # fused Q for the current query tile
        pltpu.VMEM((Tq, CATw), jnp.float32),     # staged normalized head outputs
    ]

    return pl.pallas_call(
        kernel,
        out_shape=out_shape,
        grid=(batch, nq),
        in_specs=in_specs,
        out_specs=out_specs,
        scratch_shapes=scratch_shapes,
        compiler_params=pltpu.CompilerParams(
            # batch is megacore-parallel; q-tile axis is sequential so the cached K/V
            # scratch written at qi==0 is valid for all later tiles of the same batch.
            dimension_semantics=("parallel", "arbitrary"),
            vmem_limit_bytes=64 * 1024 * 1024,   # fits the v7x (64 MiB) budget
        ),
    )


def init_params(key, d_model, d_internal, num_heads, hidden_size):
    """Deterministic synthetic parameters (PyTorch-Linear-style uniform init)."""
    D, Di, H, Hid = d_model, d_internal, num_heads, hidden_size
    keys = jax.random.split(key, 20)

    def lin(k, fan_in, shape):
        bound = 1.0 / math.sqrt(fan_in)
        return jax.random.uniform(k, shape, jnp.float32, -bound, bound)

    p = {}
    p["wq1"] = lin(keys[0], D, (H, D, Di));      p["bq1"] = lin(keys[1], D, (H, 1, Di))
    p["wk1"] = lin(keys[2], D, (H, D, Di));      p["bk1"] = lin(keys[3], D, (H, 1, Di))
    p["wv"] = lin(keys[4], D, (H, D, 2 * Di));   p["bv"] = lin(keys[5], D, (H, 1, 2 * Di))
    p["lnh_g"] = jnp.ones((1, 2 * Di), jnp.float32)
    p["lnh_b"] = jnp.zeros((1, 2 * Di), jnp.float32)
    p["wo"] = lin(keys[6], 2 * H * Di, (2 * H * Di, D))
    p["bo"] = lin(keys[7], 2 * H * Di, (1, D))
    p["ln1_g"] = jnp.ones((1, D), jnp.float32);  p["ln1_b"] = jnp.zeros((1, D), jnp.float32)
    p["w1"] = lin(keys[8], D, (D, Hid));         p["b1"] = lin(keys[9], D, (1, Hid))
    p["w2"] = lin(keys[10], Hid, (Hid, D));      p["b2"] = lin(keys[11], Hid, (1, D))
    p["ln2_g"] = jnp.ones((1, D), jnp.float32);  p["ln2_b"] = jnp.zeros((1, D), jnp.float32)
    p["lambda_q1"] = 0.1 * jax.random.normal(keys[12], (Di,), jnp.float32)
    p["lambda_k1"] = 0.1 * jax.random.normal(keys[13], (Di,), jnp.float32)
    p["lambda_q2"] = 0.1 * jax.random.normal(keys[14], (Di,), jnp.float32)
    p["lambda_k2"] = 0.1 * jax.random.normal(keys[15], (Di,), jnp.float32)
    return p


def pack_params(params, *, d_model, d_internal, num_heads, depth):
    """One-time param prep: fuse per-head projections, fold static scalars into weights."""
    D, Di, H = d_model, d_internal, num_heads
    inv_sqrt_d = 1.0 / math.sqrt(D)
    one_minus_li = 1.0 - lambda_init_fn(depth)
    # Fold the 1/sqrt(d_model) score scale into the Q projection.
    wq = jnp.concatenate([params["wq1"][h] * inv_sqrt_d for h in range(H)], axis=1)
    bq = jnp.concatenate([params["bq1"][h] * inv_sqrt_d for h in range(H)], axis=1)
    wkv = jnp.concatenate(
        [jnp.concatenate([params["wk1"][h], params["wv"][h]], axis=1) for h in range(H)],
        axis=1)
    bkv = jnp.concatenate(
        [jnp.concatenate([params["bk1"][h], params["bv"][h]], axis=1) for h in range(H)],
        axis=1)
    return {
        "w_q": wq, "b_q": bq,                           # (D, H*Di), (1, H*Di)
        "w_kv": wkv, "b_kv": bkv,                       # (D, H*3*Di), (1, H*3*Di)
        "lnh_g": params["lnh_g"], "lnh_b": params["lnh_b"],
        # Fold the (1 - lambda_init) per-head output scale into WO.
        "wo": params["wo"] * one_minus_li, "bo": params["bo"],
        "ln1_g": params["ln1_g"], "ln1_b": params["ln1_b"],
        "w1": params["w1"], "b1": params["b1"],
        "w2": params["w2"], "b2": params["b2"],
        "ln2_g": params["ln2_g"], "ln2_b": params["ln2_b"],
        "lambda_q1": params["lambda_q1"], "lambda_k1": params["lambda_k1"],
        "lambda_q2": params["lambda_q2"], "lambda_k2": params["lambda_k2"],
    }


def diff_transformer_layer_forward(x, packed, *, d_model, d_internal, num_heads,
                                   hidden_size, depth, return_attention_maps=True):
    """Wrapper: lambda reparameterization in JAX, hot path in the Pallas kernel."""
    B, T, _ = x.shape
    lam = (jnp.exp(jnp.dot(packed["lambda_q1"], packed["lambda_k1"]))
           - jnp.exp(jnp.dot(packed["lambda_q2"], packed["lambda_k2"]))
           + lambda_init_fn(depth))
    coef = (1.0 - lam).reshape(1, 1).astype(jnp.float32)   # (1 - lambda_current)

    call = make_diff_transformer_layer_call(
        d_model, d_internal, num_heads, hidden_size, T, B,
        return_attention_maps=return_attention_maps)
    outs = call(coef, x,
                packed["w_q"], packed["b_q"], packed["w_kv"], packed["b_kv"],
                packed["lnh_g"], packed["lnh_b"],
                packed["wo"], packed["bo"], packed["ln1_g"], packed["ln1_b"],
                packed["w1"], packed["b1"], packed["w2"], packed["b2"],
                packed["ln2_g"], packed["ln2_b"])
    if return_attention_maps:
        out, attn = outs
        return out, [attn[h] for h in range(num_heads)]
    (out,) = outs
    return out, []


def reference_forward(x, params, *, depth, num_heads):
    """Pure-JAX mirror of the PyTorch forward, for verification."""
    li = lambda_init_fn(depth)
    D = x.shape[-1]
    lam = (jnp.exp(jnp.dot(params["lambda_q1"], params["lambda_k1"]))
           - jnp.exp(jnp.dot(params["lambda_q2"], params["lambda_k2"])) + li)
    heads, maps = [], []
    for h in range(num_heads):
        q1 = x @ params["wq1"][h] + params["bq1"][h]
        k1 = x @ params["wk1"][h] + params["bk1"][h]
        v = x @ params["wv"][h] + params["bv"][h]
        s1 = jnp.einsum("btd,bsd->bts", q1, k1) / math.sqrt(D)
        a1 = jax.nn.softmax(s1, axis=-1)
        a = a1 - lam * a1                     # Q2/K2 reuse WQ1/WK1 -> A2 == A1
        af = jnp.einsum("bts,bsd->btd", a, v)
        ln = _layer_norm(af, params["lnh_g"], params["lnh_b"])
        heads.append(ln * (1.0 - li))
        maps.append(a)
    concat = jnp.concatenate(heads, axis=-1)
    proj = concat @ params["wo"] + params["bo"]
    r1 = _layer_norm(x + proj, params["ln1_g"], params["ln1_b"])
    ff = jax.nn.relu(r1 @ params["w1"] + params["b1"]) @ params["w2"] + params["b2"]
    r2 = _layer_norm(r1 + ff, params["ln2_g"], params["ln2_b"])
    return r2, maps


if __name__ == "__main__":
    B, T = 2, 8
    d_model, d_internal, num_heads, hidden_size, depth = 32, 16, 2, 32, 1

    key = jax.random.PRNGKey(0)
    pkey, xkey = jax.random.split(key)
    params = init_params(pkey, d_model, d_internal, num_heads, hidden_size)
    packed = pack_params(params, d_model=d_model, d_internal=d_internal,
                         num_heads=num_heads, depth=depth)
    x = jax.random.normal(xkey, (B, T, d_model), jnp.float32)

    out, attn_maps = diff_transformer_layer_forward(
        x, packed, d_model=d_model, d_internal=d_internal, num_heads=num_heads,
        hidden_size=hidden_size, depth=depth, return_attention_maps=True)
    out = jax.block_until_ready(out)
    attn_maps = [jax.block_until_ready(a) for a in attn_maps]

    ref_out, ref_maps = reference_forward(x, params, depth=depth, num_heads=num_heads)
    assert np.allclose(np.asarray(out), np.asarray(ref_out), atol=1e-3, rtol=1e-3)
    for a, ra in zip(attn_maps, ref_maps):
        assert np.allclose(np.asarray(a), np.asarray(ra), atol=1e-3, rtol=1e-3)

    print("KERNEL_OK")
</pallas_src>

<mosaic_0001>
module attributes {stable_mosaic.version = 11 : i64} {
  func.func @kernel(%arg0: i32, %arg1: i32, %arg2: memref<1x1xf32, #tpu.memory_space<smem>>, %arg3: memref<1x8x32xf32, #tpu.memory_space<vmem>>, %arg4: memref<32x32xf32, #tpu.memory_space<vmem>>, %arg5: memref<1x32xf32, #tpu.memory_space<vmem>>, %arg6: memref<32x96xf32, #tpu.memory_space<vmem>>, %arg7: memref<1x96xf32, #tpu.memory_space<vmem>>, %arg8: memref<1x32xf32, #tpu.memory_space<vmem>>, %arg9: memref<1x32xf32, #tpu.memory_space<vmem>>, %arg10: memref<64x32xf32, #tpu.memory_space<vmem>>, %arg11: memref<1x32xf32, #tpu.memory_space<vmem>>, %arg12: memref<1x32xf32, #tpu.memory_space<vmem>>, %arg13: memref<1x32xf32, #tpu.memory_space<vmem>>, %arg14: memref<32x32xf32, #tpu.memory_space<vmem>>, %arg15: memref<1x32xf32, #tpu.memory_space<vmem>>, %arg16: memref<32x32xf32, #tpu.memory_space<vmem>>, %arg17: memref<1x32xf32, #tpu.memory_space<vmem>>, %arg18: memref<1x32xf32, #tpu.memory_space<vmem>>, %arg19: memref<1x32xf32, #tpu.memory_space<vmem>>, %arg20: memref<1x8x32xf32, #tpu.memory_space<vmem>>, %arg21: memref<2x1x8x8xf32, #tpu.memory_space<vmem>>, %arg22: memref<8x96xf32, #tpu.memory_space<vmem>>, %arg23: memref<8x32xf32, #tpu.memory_space<vmem>>, %arg24: memref<8x64xf32, #tpu.memory_space<vmem>>) attributes {dimension_semantics = [#tpu.dimension_semantics<parallel>, #tpu.dimension_semantics<arbitrary>], iteration_bounds = array<i64: 2, 1>, scalar_prefetch = 0 : i64, scratch_operands = 3 : i64, tpu.core_type = #tpu.core_type<tc>, window_params = [{transform_indices = @transform_0, window_bounds = array<i64: 1, 1>}, {transform_indices = @transform_1, window_bounds = array<i64: 1, 8, 32>}, {pipeline_mode = #tpu.pipeline_mode<synchronous>, transform_indices = @transform_2, window_bounds = array<i64: 32, 32>}, {pipeline_mode = #tpu.pipeline_mode<synchronous>, transform_indices = @transform_3, window_bounds = array<i64: 1, 32>}, {pipeline_mode = #tpu.pipeline_mode<synchronous>, transform_indices = @transform_4, window_bounds = array<i64: 32, 96>}, {pipeline_mode = #tpu.pipeline_mode<synchronous>, transform_indices = @transform_5, window_bounds = array<i64: 1, 96>}, {pipeline_mode = #tpu.pipeline_mode<synchronous>, transform_indices = @transform_6, window_bounds = array<i64: 1, 32>}, {pipeline_mode = #tpu.pipeline_mode<synchronous>, transform_indices = @transform_7, window_bounds = array<i64: 1, 32>}, {pipeline_mode = #tpu.pipeline_mode<synchronous>, transform_indices = @transform_8, window_bounds = array<i64: 64, 32>}, {pipeline_mode = #tpu.pipeline_mode<synchronous>, transform_indices = @transform_9, window_bounds = array<i64: 1, 32>}, {pipeline_mode = #tpu.pipeline_mode<synchronous>, transform_indices = @transform_10, window_bounds = array<i64: 1, 32>}, {pipeline_mode = #tpu.pipeline_mode<synchronous>, transform_indices = @transform_11, window_bounds = array<i64: 1, 32>}, {pipeline_mode = #tpu.pipeline_mode<synchronous>, transform_indices = @transform_12, window_bounds = array<i64: 32, 32>}, {pipeline_mode = #tpu.pipeline_mode<synchronous>, transform_indices = @transform_13, window_bounds = array<i64: 1, 32>}, {pipeline_mode = #tpu.pipeline_mode<synchronous>, transform_indices = @transform_14, window_bounds = array<i64: 32, 32>}, {pipeline_mode = #tpu.pipeline_mode<synchronous>, transform_indices = @transform_15, window_bounds = array<i64: 1, 32>}, {pipeline_mode = #tpu.pipeline_mode<synchronous>, transform_indices = @transform_16, window_bounds = array<i64: 1, 32>}, {pipeline_mode = #tpu.pipeline_mode<synchronous>, transform_indices = @transform_17, window_bounds = array<i64: 1, 32>}, {transform_indices = @transform_18, window_bounds = array<i64: 1, 8, 32>}, {transform_indices = @transform_19, window_bounds = array<i64: 2, 1, 8, 8>}]} {
    %c8_i32 = arith.constant 8 : i32
    %0 = arith.muli %arg1, %c8_i32 : i32
    %1 = tpu.assume_multiple %0, 8 : i32
    %c0 = arith.constant 0 : index
    %c0_0 = arith.constant 0 : index
    %2 = memref.load %arg2[%c0, %c0_0] : memref<1x1xf32, #tpu.memory_space<smem>>
    %c0_i32 = arith.constant 0 : i32
    %3 = arith.cmpi eq, %arg1, %c0_i32 : i32
    %4 = arith.extui %3 : i1 to i32
    %c0_i32_1 = arith.constant 0 : i32
    %5 = arith.cmpi ne, %4, %c0_i32_1 : i32
    scf.if %5 {
      %c0_90 = arith.constant 0 : index
      %c0_91 = arith.constant 0 : index
      %c0_92 = arith.constant 0 : index
      %172 = vector.load %arg3[%c0_90, %c0_91, %c0_92] : memref<1x8x32xf32, #tpu.memory_space<vmem>>, vector<1x8x32xf32>
      %173 = vector.shape_cast %172 : vector<1x8x32xf32> to vector<8x32xf32>
      %c0_93 = arith.constant 0 : index
      %c0_94 = arith.constant 0 : index
      %174 = vector.load %arg6[%c0_93, %c0_94] : memref<32x96xf32, #tpu.memory_space<vmem>>, vector<32x96xf32>
      %cst_95 = arith.constant dense<0.000000e+00> : vector<8x96xf32>
      %175 = tpu.matmul %173, %174, %cst_95 {dimension_numbers = #tpu.dot_dimension_numbers<[1], [0], [0], [1], [0, 0, 1, 1], [], []>} : vector<8x32xf32>, vector<32x96xf32>, vector<8x96xf32> -> vector<8x96xf32>
      %c0_96 = arith.constant 0 : index
      %c0_97 = arith.constant 0 : index
      %176 = vector.load %arg7[%c0_96, %c0_97] : memref<1x96xf32, #tpu.memory_space<vmem>>, vector<1x96xf32>
      %177 = vector.broadcast %176 : vector<1x96xf32> to vector<8x96xf32>
      %178 = arith.addf %175, %177 : vector<8x96xf32>
      %c0_98 = arith.constant 0 : index
      %c0_99 = arith.constant 0 : index
      %179 = vector.load %arg22[%c0_98, %c0_99] : memref<8x96xf32, #tpu.memory_space<vmem>>, vector<8x96xf32>
      tpu.vector_store %arg22[%c0_98, %c0_99], %178 {strides = array<i32>} : memref<8x96xf32, #tpu.memory_space<vmem>>, vector<8x96xf32>,
    } else {
    }
    %c0_2 = arith.constant 0 : index
    %6 = arith.index_cast %1 : i32 to index
    %c0_3 = arith.constant 0 : index
    %7 = vector.load %arg3[%c0_2, %6, %c0_3] : memref<1x8x32xf32, #tpu.memory_space<vmem>>, vector<1x8x32xf32>
    %8 = vector.shape_cast %7 : vector<1x8x32xf32> to vector<8x32xf32>
    %c0_4 = arith.constant 0 : index
    %c0_5 = arith.constant 0 : index
    %9 = vector.load %arg4[%c0_4, %c0_5] : memref<32x32xf32, #tpu.memory_space<vmem>>, vector<32x32xf32>
    %cst = arith.constant dense<0.000000e+00> : vector<8x32xf32>
    %10 = tpu.matmul %8, %9, %cst {dimension_numbers = #tpu.dot_dimension_numbers<[1], [0], [0], [1], [0, 0, 1, 1], [], []>} : vector<8x32xf32>, vector<32x32xf32>, vector<8x32xf32> -> vector<8x32xf32>
    %c0_6 = arith.constant 0 : index
    %c0_7 = arith.constant 0 : index
    %11 = vector.load %arg5[%c0_6, %c0_7] : memref<1x32xf32, #tpu.memory_space<vmem>>, vector<1x32xf32>
    %12 = vector.broadcast %11 : vector<1x32xf32> to vector<8x32xf32>
    %13 = arith.addf %10, %12 : vector<8x32xf32>
    %c0_8 = arith.constant 0 : index
    %c0_9 = arith.constant 0 : index
    %14 = vector.load %arg23[%c0_8, %c0_9] : memref<8x32xf32, #tpu.memory_space<vmem>>, vector<8x32xf32>
    tpu.vector_store %arg23[%c0_8, %c0_9], %13 {strides = array<i32>} : memref<8x32xf32, #tpu.memory_space<vmem>>, vector<8x32xf32>,
    %c0_10 = arith.constant 0 : index
    %c0_11 = arith.constant 0 : index
    %15 = vector.load %arg8[%c0_10, %c0_11] : memref<1x32xf32, #tpu.memory_space<vmem>>, vector<1x32xf32>
    %c0_12 = arith.constant 0 : index
    %c0_13 = arith.constant 0 : index
    %16 = vector.load %arg9[%c0_12, %c0_13] : memref<1x32xf32, #tpu.memory_space<vmem>>, vector<1x32xf32>
    %c0_14 = arith.constant 0 : index
    %c0_15 = arith.constant 0 : index
    %17 = vector.load %arg23[%c0_14, %c0_15] : memref<8x32xf32, #tpu.memory_space<vmem>>, vector<8x16xf32>
    %c0_16 = arith.constant 0 : index
    %c0_17 = arith.constant 0 : index
    %18 = vector.load %arg22[%c0_16, %c0_17] : memref<8x96xf32, #tpu.memory_space<vmem>>, vector<8x16xf32>
    %c0_18 = arith.constant 0 : index
    %c16 = arith.constant 16 : index
    %19 = vector.load %arg22[%c0_18, %c16] : memref<8x96xf32, #tpu.memory_space<vmem>>, vector<8x32xf32>
    %cst_19 = arith.constant dense<0.000000e+00> : vector<8x8xf32>
    %20 = tpu.matmul %17, %18, %cst_19 {dimension_numbers = #tpu.dot_dimension_numbers<[1], [1], [0], [0], [0, 0, 1, 0], [], []>} : vector<8x16xf32>, vector<8x16xf32>, vector<8x8xf32> -> vector<8x8xf32>
    %cst_20 = arith.constant dense<0xFF800000> : vector<8xf32>
    %21 = vector.multi_reduction <maximumf>, %20, %cst_20 [1] : vector<8x8xf32> to vector<8xf32>
    %22 = vector.shape_cast %21 : vector<8xf32> to vector<8x1xf32>
    %23 = vector.broadcast %22 : vector<8x1xf32> to vector<8x8xf32>
    %24 = arith.subf %20, %23 : vector<8x8xf32>
    %25 = math.exp %24 : vector<8x8xf32>
    %cst_21 = arith.constant dense<0.000000e+00> : vector<8xf32>
    %26 = vector.multi_reduction <add>, %25, %cst_21 [1] : vector<8x8xf32> to vector<8xf32>
    %27 = vector.shape_cast %26 : vector<8xf32> to vector<8x1xf32>
    %28 = vector.broadcast %2 : f32 to vector<8x1xf32>
    %29 = arith.divf %28, %27 : vector<8x1xf32>
    %30 = vector.broadcast %29 : vector<8x1xf32> to vector<8x8xf32>
    %31 = arith.mulf %25, %30 : vector<8x8xf32>
    %c0_22 = arith.constant 0 : index
    %c0_23 = arith.constant 0 : index
    %c0_24 = arith.constant 0 : index
    %c0_25 = arith.constant 0 : index
    %32 = vector.load %arg21[%c0_22, %c0_23, %c0_24, %c0_25] : memref<2x1x8x8xf32, #tpu.memory_space<vmem>>, vector<1x1x8x8xf32>
    %33 = vector.shape_cast %32 : vector<1x1x8x8xf32> to vector<8x8xf32>
    %34 = vector.shape_cast %31 : vector<8x8xf32> to vector<1x1x8x8xf32>
    tpu.vector_store %arg21[%c0_22, %c0_23, %c0_24, %c0_25], %34 {strides = array<i32>} : memref<2x1x8x8xf32, #tpu.memory_space<vmem>>, vector<1x1x8x8xf32>,
    %cst_26 = arith.constant dense<0.000000e+00> : vector<8x32xf32>
    %35 = tpu.matmul %31, %19, %cst_26 {dimension_numbers = #tpu.dot_dimension_numbers<[1], [0], [0], [1], [0, 0, 1, 1], [], []>} : vector<8x8xf32>, vector<8x32xf32>, vector<8x32xf32> -> vector<8x32xf32>
    %cst_27 = arith.constant dense<0.000000e+00> : vector<8xf32>
    %36 = vector.multi_reduction <add>, %35, %cst_27 [1] : vector<8x32xf32> to vector<8xf32>
    %37 = vector.shape_cast %36 : vector<8xf32> to vector<8x1xf32>
    %cst_28 = arith.constant 3.200000e+01 : f32
    %38 = vector.broadcast %cst_28 : f32 to vector<8x1xf32>
    %39 = arith.divf %37, %38 : vector<8x1xf32>
    %40 = vector.broadcast %39 : vector<8x1xf32> to vector<8x32xf32>
    %41 = arith.subf %35, %40 : vector<8x32xf32>
    %42 = arith.mulf %41, %41 : vector<8x32xf32>
    %cst_29 = arith.constant dense<0.000000e+00> : vector<8xf32>
    %43 = vector.multi_reduction <add>, %42, %cst_29 [1] : vector<8x32xf32> to vector<8xf32>
    %44 = vector.shape_cast %43 : vector<8xf32> to vector<8x1xf32>
    %cst_30 = arith.constant 3.200000e+01 : f32
    %45 = vector.broadcast %cst_30 : f32 to vector<8x1xf32>
    %46 = arith.divf %44, %45 : vector<8x1xf32>
    %47 = vector.broadcast %39 : vector<8x1xf32> to vector<8x32xf32>
    %48 = arith.subf %35, %47 : vector<8x32xf32>
    %cst_31 = arith.constant 9.99999974E-6 : f32
    %49 = vector.broadcast %cst_31 : f32 to vector<8x1xf32>
    %50 = arith.addf %46, %49 : vector<8x1xf32>
    %51 = math.rsqrt %50 : vector<8x1xf32>
    %52 = vector.broadcast %51 : vector<8x1xf32> to vector<8x32xf32>
    %53 = arith.mulf %48, %52 : vector<8x32xf32>
    %54 = vector.broadcast %15 : vector<1x32xf32> to vector<8x32xf32>
    %55 = arith.mulf %53, %54 : vector<8x32xf32>
    %56 = vector.broadcast %16 : vector<1x32xf32> to vector<8x32xf32>
    %57 = arith.addf %55, %56 : vector<8x32xf32>
    %c0_32 = arith.constant 0 : index
    %c0_33 = arith.constant 0 : index
    %58 = vector.load %arg24[%c0_32, %c0_33] : memref<8x64xf32, #tpu.memory_space<vmem>>, vector<8x32xf32>
    tpu.vector_store %arg24[%c0_32, %c0_33], %57 {strides = array<i32>} : memref<8x64xf32, #tpu.memory_space<vmem>>, vector<8x32xf32>,
    %c0_34 = arith.constant 0 : index
    %c16_35 = arith.constant 16 : index
    %59 = vector.load %arg23[%c0_34, %c16_35] : memref<8x32xf32, #tpu.memory_space<vmem>>, vector<8x16xf32>
    %c0_36 = arith.constant 0 : index
    %c48 = arith.constant 48 : index
    %60 = vector.load %arg22[%c0_36, %c48] : memref<8x96xf32, #tpu.memory_space<vmem>>, vector<8x16xf32>
    %c0_37 = arith.constant 0 : index
    %c64 = arith.constant 64 : index
    %61 = vector.load %arg22[%c0_37, %c64] : memref<8x96xf32, #tpu.memory_space<vmem>>, vector<8x32xf32>
    %cst_38 = arith.constant dense<0.000000e+00> : vector<8x8xf32>
    %62 = tpu.matmul %59, %60, %cst_38 {dimension_numbers = #tpu.dot_dimension_numbers<[1], [1], [0], [0], [0, 0, 1, 0], [], []>} : vector<8x16xf32>, vector<8x16xf32>, vector<8x8xf32> -> vector<8x8xf32>
    %cst_39 = arith.constant dense<0xFF800000> : vector<8xf32>
    %63 = vector.multi_reduction <maximumf>, %62, %cst_39 [1] : vector<8x8xf32> to vector<8xf32>
    %64 = vector.shape_cast %63 : vector<8xf32> to vector<8x1xf32>
    %65 = vector.broadcast %64 : vector<8x1xf32> to vector<8x8xf32>
    %66 = arith.subf %62, %65 : vector<8x8xf32>
    %67 = math.exp %66 : vector<8x8xf32>
    %cst_40 = arith.constant dense<0.000000e+00> : vector<8xf32>
    %68 = vector.multi_reduction <add>, %67, %cst_40 [1] : vector<8x8xf32> to vector<8xf32>
    %69 = vector.shape_cast %68 : vector<8xf32> to vector<8x1xf32>
    %70 = vector.broadcast %2 : f32 to vector<8x1xf32>
    %71 = arith.divf %70, %69 : vector<8x1xf32>
    %72 = vector.broadcast %71 : vector<8x1xf32> to vector<8x8xf32>
    %73 = arith.mulf %67, %72 : vector<8x8xf32>
    %c1 = arith.constant 1 : index
    %c0_41 = arith.constant 0 : index
    %c0_42 = arith.constant 0 : index
    %c0_43 = arith.constant 0 : index
    %74 = vector.load %arg21[%c1, %c0_41, %c0_42, %c0_43] : memref<2x1x8x8xf32, #tpu.memory_space<vmem>>, vector<1x1x8x8xf32>
    %75 = vector.shape_cast %74 : vector<1x1x8x8xf32> to vector<8x8xf32>
    %76 = vector.shape_cast %73 : vector<8x8xf32> to vector<1x1x8x8xf32>
    tpu.vector_store %arg21[%c1, %c0_41, %c0_42, %c0_43], %76 {strides = array<i32>} : memref<2x1x8x8xf32, #tpu.memory_space<vmem>>, vector<1x1x8x8xf32>,
    %cst_44 = arith.constant dense<0.000000e+00> : vector<8x32xf32>
    %77 = tpu.matmul %73, %61, %cst_44 {dimension_numbers = #tpu.dot_dimension_numbers<[1], [0], [0], [1], [0, 0, 1, 1], [], []>} : vector<8x8xf32>, vector<8x32xf32>, vector<8x32xf32> -> vector<8x32xf32>
    %cst_45 = arith.constant dense<0.000000e+00> : vector<8xf32>
    %78 = vector.multi_reduction <add>, %77, %cst_45 [1] : vector<8x32xf32> to vector<8xf32>
    %79 = vector.shape_cast %78 : vector<8xf32> to vector<8x1xf32>
    %cst_46 = arith.constant 3.200000e+01 : f32
    %80 = vector.broadcast %cst_46 : f32 to vector<8x1xf32>
    %81 = arith.divf %79, %80 : vector<8x1xf32>
    %82 = vector.broadcast %81 : vector<8x1xf32> to vector<8x32xf32>
    %83 = arith.subf %77, %82 : vector<8x32xf32>
    %84 = arith.mulf %83, %83 : vector<8x32xf32>
    %cst_47 = arith.constant dense<0.000000e+00> : vector<8xf32>
    %85 = vector.multi_reduction <add>, %84, %cst_47 [1] : vector<8x32xf32> to vector<8xf32>
    %86 = vector.shape_cast %85 : vector<8xf32> to vector<8x1xf32>
    %cst_48 = arith.constant 3.200000e+01 : f32
    %87 = vector.broadcast %cst_48 : f32 to vector<8x1xf32>
    %88 = arith.divf %86, %87 : vector<8x1xf32>
    %89 = vector.broadcast %81 : vector<8x1xf32> to vector<8x32xf32>
    %90 = arith.subf %77, %89 : vector<8x32xf32>
    %cst_49 = arith.constant 9.99999974E-6 : f32
    %91 = vector.broadcast %cst_49 : f32 to vector<8x1xf32>
    %92 = arith.addf %88, %91 : vector<8x1xf32>
    %93 = math.rsqrt %92 : vector<8x1xf32>
    %94 = vector.broadcast %93 : vector<8x1xf32> to vector<8x32xf32>
    %95 = arith.mulf %90, %94 : vector<8x32xf32>
    %96 = vector.broadcast %15 : vector<1x32xf32> to vector<8x32xf32>
    %97 = arith.mulf %95, %96 : vector<8x32xf32>
    %98 = vector.broadcast %16 : vector<1x32xf32> to vector<8x32xf32>
    %99 = arith.addf %97, %98 : vector<8x32xf32>
    %c0_50 = arith.constant 0 : index
    %c32 = arith.constant 32 : index
    %100 = vector.load %arg24[%c0_50, %c32] : memref<8x64xf32, #tpu.memory_space<vmem>>, vector<8x32xf32>
    tpu.vector_store %arg24[%c0_50, %c32], %99 {strides = array<i32>} : memref<8x64xf32, #tpu.memory_space<vmem>>, vector<8x32xf32>,
    %c0_51 = arith.constant 0 : index
    %c0_52 = arith.constant 0 : index
    %101 = vector.load %arg24[%c0_51, %c0_52] : memref<8x64xf32, #tpu.memory_space<vmem>>, vector<8x64xf32>
    %c0_53 = arith.constant 0 : index
    %c0_54 = arith.constant 0 : index
    %102 = vector.load %arg10[%c0_53, %c0_54] : memref<64x32xf32, #tpu.memory_space<vmem>>, vector<64x32xf32>
    %cst_55 = arith.constant dense<0.000000e+00> : vector<8x32xf32>
    %103 = tpu.matmul %101, %102, %cst_55 {dimension_numbers = #tpu.dot_dimension_numbers<[1], [0], [0], [1], [0, 0, 1, 1], [], []>} : vector<8x64xf32>, vector<64x32xf32>, vector<8x32xf32> -> vector<8x32xf32>
    %c0_56 = arith.constant 0 : index
    %c0_57 = arith.constant 0 : index
    %104 = vector.load %arg11[%c0_56, %c0_57] : memref<1x32xf32, #tpu.memory_space<vmem>>, vector<1x32xf32>
    %105 = vector.broadcast %104 : vector<1x32xf32> to vector<8x32xf32>
    %106 = arith.addf %103, %105 : vector<8x32xf32>
    %107 = arith.addf %8, %106 : vector<8x32xf32>
    %c0_58 = arith.constant 0 : index
    %c0_59 = arith.constant 0 : index
    %108 = vector.load %arg12[%c0_58, %c0_59] : memref<1x32xf32, #tpu.memory_space<vmem>>, vector<1x32xf32>
    %c0_60 = arith.constant 0 : index
    %c0_61 = arith.constant 0 : index
    %109 = vector.load %arg13[%c0_60, %c0_61] : memref<1x32xf32, #tpu.memory_space<vmem>>, vector<1x32xf32>
    %cst_62 = arith.constant dense<0.000000e+00> : vector<8xf32>
    %110 = vector.multi_reduction <add>, %107, %cst_62 [1] : vector<8x32xf32> to vector<8xf32>
    %111 = vector.shape_cast %110 : vector<8xf32> to vector<8x1xf32>
    %cst_63 = arith.constant 3.200000e+01 : f32
    %112 = vector.broadcast %cst_63 : f32 to vector<8x1xf32>
    %113 = arith.divf %111, %112 : vector<8x1xf32>
    %114 = vector.broadcast %113 : vector<8x1xf32> to vector<8x32xf32>
    %115 = arith.subf %107, %114 : vector<8x32xf32>
    %116 = arith.mulf %115, %115 : vector<8x32xf32>
    %cst_64 = arith.constant dense<0.000000e+00> : vector<8xf32>
    %117 = vector.multi_reduction <add>, %116, %cst_64 [1] : vector<8x32xf32> to vector<8xf32>
    %118 = vector.shape_cast %117 : vector<8xf32> to vector<8x1xf32>
    %cst_65 = arith.constant 3.200000e+01 : f32
    %119 = vector.broadcast %cst_65 : f32 to vector<8x1xf32>
    %120 = arith.divf %118, %119 : vector<8x1xf32>
    %121 = vector.broadcast %113 : vector<8x1xf32> to vector<8x32xf32>
    %122 = arith.subf %107, %121 : vector<8x32xf32>
    %cst_66 = arith.constant 9.99999974E-6 : f32
    %123 = vector.broadcast %cst_66 : f32 to vector<8x1xf32>
    %124 = arith.addf %120, %123 : vector<8x1xf32>
    %125 = math.rsqrt %124 : vector<8x1xf32>
    %126 = vector.broadcast %125 : vector<8x1xf32> to vector<8x32xf32>
    %127 = arith.mulf %122, %126 : vector<8x32xf32>
    %128 = vector.broadcast %108 : vector<1x32xf32> to vector<8x32xf32>
    %129 = arith.mulf %127, %128 : vector<8x32xf32>
    %130 = vector.broadcast %109 : vector<1x32xf32> to vector<8x32xf32>
    %131 = arith.addf %129, %130 : vector<8x32xf32>
    %c0_67 = arith.constant 0 : index
    %c0_68 = arith.constant 0 : index
    %132 = vector.load %arg14[%c0_67, %c0_68] : memref<32x32xf32, #tpu.memory_space<vmem>>, vector<32x32xf32>
    %cst_69 = arith.constant dense<0.000000e+00> : vector<8x32xf32>
    %133 = tpu.matmul %131, %132, %cst_69 {dimension_numbers = #tpu.dot_dimension_numbers<[1], [0], [0], [1], [0, 0, 1, 1], [], []>} : vector<8x32xf32>, vector<32x32xf32>, vector<8x32xf32> -> vector<8x32xf32>
    %c0_70 = arith.constant 0 : index
    %c0_71 = arith.constant 0 : index
    %134 = vector.load %arg15[%c0_70, %c0_71] : memref<1x32xf32, #tpu.memory_space<vmem>>, vector<1x32xf32>
    %135 = vector.broadcast %134 : vector<1x32xf32> to vector<8x32xf32>
    %136 = arith.addf %133, %135 : vector<8x32xf32>
    %cst_72 = arith.constant 0.000000e+00 : f32
    %137 = vector.broadcast %cst_72 : f32 to vector<8x32xf32>
    %138 = arith.maximumf %136, %137 : vector<8x32xf32>
    %c0_73 = arith.constant 0 : index
    %c0_74 = arith.constant 0 : index
    %139 = vector.load %arg16[%c0_73, %c0_74] : memref<32x32xf32, #tpu.memory_space<vmem>>, vector<32x32xf32>
    %cst_75 = arith.constant dense<0.000000e+00> : vector<8x32xf32>
    %140 = tpu.matmul %138, %139, %cst_75 {dimension_numbers = #tpu.dot_dimension_numbers<[1], [0], [0], [1], [0, 0, 1, 1], [], []>} : vector<8x32xf32>, vector<32x32xf32>, vector<8x32xf32> -> vector<8x32xf32>
    %c0_76 = arith.constant 0 : index
    %c0_77 = arith.constant 0 : index
    %141 = vector.load %arg17[%c0_76, %c0_77] : memref<1x32xf32, #tpu.memory_space<vmem>>, vector<1x32xf32>
    %142 = vector.broadcast %141 : vector<1x32xf32> to vector<8x32xf32>
    %143 = arith.addf %140, %142 : vector<8x32xf32>
    %144 = arith.addf %131, %143 : vector<8x32xf32>
    %c0_78 = arith.constant 0 : index
    %c0_79 = arith.constant 0 : index
    %145 = vector.load %arg18[%c0_78, %c0_79] : memref<1x32xf32, #tpu.memory_space<vmem>>, vector<1x32xf32>
    %c0_80 = arith.constant 0 : index
    %c0_81 = arith.constant 0 : index
    %146 = vector.load %arg19[%c0_80, %c0_81] : memref<1x32xf32, #tpu.memory_space<vmem>>, vector<1x32xf32>
    %cst_82 = arith.constant dense<0.000000e+00> : vector<8xf32>
    %147 = vector.multi_reduction <add>, %144, %cst_82 [1] : vector<8x32xf32> to vector<8xf32>
    %148 = vector.shape_cast %147 : vector<8xf32> to vector<8x1xf32>
    %cst_83 = arith.constant 3.200000e+01 : f32
    %149 = vector.broadcast %cst_83 : f32 to vector<8x1xf32>
    %150 = arith.divf %148, %149 : vector<8x1xf32>
    %151 = vector.broadcast %150 : vector<8x1xf32> to vector<8x32xf32>
    %152 = arith.subf %144, %151 : vector<8x32xf32>
    %153 = arith.mulf %152, %152 : vector<8x32xf32>
    %cst_84 = arith.constant dense<0.000000e+00> : vector<8xf32>
    %154 = vector.multi_reduction <add>, %153, %cst_84 [1] : vector<8x32xf32> to vector<8xf32>
    %155 = vector.shape_cast %154 : vector<8xf32> to vector<8x1xf32>
    %cst_85 = arith.constant 3.200000e+01 : f32
    %156 = vector.broadcast %cst_85 : f32 to vector<8x1xf32>
    %157 = arith.divf %155, %156 : vector<8x1xf32>
    %158 = vector.broadcast %150 : vector<8x1xf32> to vector<8x32xf32>
    %159 = arith.subf %144, %158 : vector<8x32xf32>
    %cst_86 = arith.constant 9.99999974E-6 : f32
    %160 = vector.broadcast %cst_86 : f32 to vector<8x1xf32>
    %161 = arith.addf %157, %160 : vector<8x1xf32>
    %162 = math.rsqrt %161 : vector<8x1xf32>
    %163 = vector.broadcast %162 : vector<8x1xf32> to vector<8x32xf32>
    %164 = arith.mulf %159, %163 : vector<8x32xf32>
    %165 = vector.broadcast %145 : vector<1x32xf32> to vector<8x32xf32>
    %166 = arith.mulf %164, %165 : vector<8x32xf32>
    %167 = vector.broadcast %146 : vector<1x32xf32> to vector<8x32xf32>
    %168 = arith.addf %166, %167 : vector<8x32xf32>
    %c0_87 = arith.constant 0 : index
    %c0_88 = arith.constant 0 : index
    %c0_89 = arith.constant 0 : index
    %169 = vector.load %arg20[%c0_87, %c0_88, %c0_89] : memref<1x8x32xf32, #tpu.memory_space<vmem>>, vector<1x8x32xf32>
    %170 = vector.shape_cast %169 : vector<1x8x32xf32> to vector<8x32xf32>
    %171 = vector.shape_cast %168 : vector<8x32xf32> to vector<1x8x32xf32>
    tpu.vector_store %arg20[%c0_87, %c0_88, %c0_89], %171 {strides = array<i32>} : memref<1x8x32xf32, #tpu.memory_space<vmem>>, vector<1x8x32xf32>,
    return
  }
  func.func @transform_0(%arg0: i32, %arg1: i32) -> (i32, i32) {
    %c0_i32 = arith.constant 0 : i32
    %c0_i32_0 = arith.constant 0 : i32
    %c0_i32_1 = arith.constant 0 : i32
    return %c0_i32, %c0_i32_0 : i32, i32
  }
  func.func @transform_1(%arg0: i32, %arg1: i32) -> (i32, i32, i32) {
    %c0_i32 = arith.constant 0 : i32
    %c0_i32_0 = arith.constant 0 : i32
    %c0_i32_1 = arith.constant 0 : i32
    return %arg0, %c0_i32, %c0_i32_0 : i32, i32, i32
  }
  func.func @transform_2(%arg0: i32, %arg1: i32) -> (i32, i32) {
    %c0_i32 = arith.constant 0 : i32
    %c0_i32_0 = arith.constant 0 : i32
    %c0_i32_1 = arith.constant 0 : i32
    return %c0_i32, %c0_i32_0 : i32, i32
  }
  func.func @transform_3(%arg0: i32, %arg1: i32) -> (i32, i32) {
    %c0_i32 = arith.constant 0 : i32
    %c0_i32_0 = arith.constant 0 : i32
    %c0_i32_1 = arith.constant 0 : i32
    return %c0_i32, %c0_i32_0 : i32, i32
  }
  func.func @transform_4(%arg0: i32, %arg1: i32) -> (i32, i32) {
    %c0_i32 = arith.constant 0 : i32
    %c0_i32_0 = arith.constant 0 : i32
    %c0_i32_1 = arith.constant 0 : i32
    return %c0_i32, %c0_i32_0 : i32, i32
  }
  func.func @transform_5(%arg0: i32, %arg1: i32) -> (i32, i32) {
    %c0_i32 = arith.constant 0 : i32
    %c0_i32_0 = arith.constant 0 : i32
    %c0_i32_1 = arith.constant 0 : i32
    return %c0_i32, %c0_i32_0 : i32, i32
  }
  func.func @transform_6(%arg0: i32, %arg1: i32) -> (i32, i32) {
    %c0_i32 = arith.constant 0 : i32
    %c0_i32_0 = arith.constant 0 : i32
    %c0_i32_1 = arith.constant 0 : i32
    return %c0_i32, %c0_i32_0 : i32, i32
  }
  func.func @transform_7(%arg0: i32, %arg1: i32) -> (i32, i32) {
    %c0_i32 = arith.constant 0 : i32
    %c0_i32_0 = arith.constant 0 : i32
    %c0_i32_1 = arith.constant 0 : i32
    return %c0_i32, %c0_i32_0 : i32, i32
  }
  func.func @transform_8(%arg0: i32, %arg1: i32) -> (i32, i32) {
    %c0_i32 = arith.constant 0 : i32
    %c0_i32_0 = arith.constant 0 : i32
    %c0_i32_1 = arith.constant 0 : i32
    return %c0_i32, %c0_i32_0 : i32, i32
  }
  func.func @transform_9(%arg0: i32, %arg1: i32) -> (i32, i32) {
    %c0_i32 = arith.constant 0 : i32
    %c0_i32_0 = arith.constant 0 : i32
    %c0_i32_1 = arith.constant 0 : i32
    return %c0_i32, %c0_i32_0 : i32, i32
  }
  func.func @transform_10(%arg0: i32, %arg1: i32) -> (i32, i32) {
    %c0_i32 = arith.constant 0 : i32
    %c0_i32_0 = arith.constant 0 : i32
    %c0_i32_1 = arith.constant 0 : i32
    return %c0_i32, %c0_i32_0 : i32, i32
  }
  func.func @transform_11(%arg0: i32, %arg1: i32) -> (i32, i32) {
    %c0_i32 = arith.constant 0 : i32
    %c0_i32_0 = arith.constant 0 : i32
    %c0_i32_1 = arith.constant 0 : i32
    return %c0_i32, %c0_i32_0 : i32, i32
  }
  func.func @transform_12(%arg0: i32, %arg1: i32) -> (i32, i32) {
    %c0_i32 = arith.constant 0 : i32
    %c0_i32_0 = arith.constant 0 : i32
    %c0_i32_1 = arith.constant 0 : i32
    return %c0_i32, %c0_i32_0 : i32, i32
  }
  func.func @transform_13(%arg0: i32, %arg1: i32) -> (i32, i32) {
    %c0_i32 = arith.constant 0 : i32
    %c0_i32_0 = arith.constant 0 : i32
    %c0_i32_1 = arith.constant 0 : i32
    return %c0_i32, %c0_i32_0 : i32, i32
  }
  func.func @transform_14(%arg0: i32, %arg1: i32) -> (i32, i32) {
    %c0_i32 = arith.constant 0 : i32
    %c0_i32_0 = arith.constant 0 : i32
    %c0_i32_1 = arith.constant 0 : i32
    return %c0_i32, %c0_i32_0 : i32, i32
  }
  func.func @transform_15(%arg0: i32, %arg1: i32) -> (i32, i32) {
    %c0_i32 = arith.constant 0 : i32
    %c0_i32_0 = arith.constant 0 : i32
    %c0_i32_1 = arith.constant 0 : i32
    return %c0_i32, %c0_i32_0 : i32, i32
  }
  func.func @transform_16(%arg0: i32, %arg1: i32) -> (i32, i32) {
    %c0_i32 = arith.constant 0 : i32
    %c0_i32_0 = arith.constant 0 : i32
    %c0_i32_1 = arith.constant 0 : i32
    return %c0_i32, %c0_i32_0 : i32, i32
  }
  func.func @transform_17(%arg0: i32, %arg1: i32) -> (i32, i32) {
    %c0_i32 = arith.constant 0 : i32
    %c0_i32_0 = arith.constant 0 : i32
    %c0_i32_1 = arith.constant 0 : i32
    return %c0_i32, %c0_i32_0 : i32, i32
  }
  func.func @transform_18(%arg0: i32, %arg1: i32) -> (i32, i32, i32) {
    %c0_i32 = arith.constant 0 : i32
    %c0_i32_0 = arith.constant 0 : i32
    return %arg0, %arg1, %c0_i32 : i32, i32, i32
  }
  func.func @transform_19(%arg0: i32, %arg1: i32) -> (i32, i32, i32, i32) {
    %c0_i32 = arith.constant 0 : i32
    %c0_i32_0 = arith.constant 0 : i32
    %c0_i32_1 = arith.constant 0 : i32
    return %c0_i32, %arg0, %arg1, %c0_i32_0 : i32, i32, i32, i32
  }
}

</mosaic_0001>

<llo_original>
// kernel: tpu_custom_call.1
$region0: #{tpu_custom_call.1}
  #allocation0 [shape = 'u32[]', space=smem, size = 0x4, offset = 0x4, fixed_abs, tag = 'smem constant byte address 0x4 - core index']
  #allocation1 [shape = 'u32[72,128]{1,0:T(1,128)}', space=vmem, size = 0x9000, scoped, tag = 'internal scratch']
  #allocation2 [shape = 'f32[8,96]{1,0:T(8,128)}', space=vmem, size = 0x1000, scoped, tag = 'scratch operand']
  #allocation3 [shape = 'f32[8,32]{1,0:T(8,128)}', space=vmem, size = 0x1000, scoped, tag = 'scratch operand']
  #allocation4 [shape = 'f32[8,64]{1,0:T(8,128)}', space=vmem, size = 0x1000, scoped, tag = 'scratch operand']
  #allocation5 [shape = 'f32[1,1]{1,0:T(1,128)S(6)}', space=smem, size = 0x200, scoped, tag = 'scoped memory for tpu_custom_call.1']
  %s0 = inlined_call_operand.<no memory space> [shape: f32[1,1], index: 0, kind: input, shape index: {}]
  %s1 = inlined_call_operand.hbm [shape: f32[2,8,32], index: 1, kind: input, shape index: {}]
  %s2 = inlined_call_operand.vmem [shape: f32[32,32], index: 2, kind: input, shape index: {}]
  %s3 = inlined_call_operand.vmem [shape: f32[1,32], index: 3, kind: input, shape index: {}]
  %s4 = inlined_call_operand.vmem [shape: f32[32,96], index: 4, kind: input, shape index: {}]
  %s5 = inlined_call_operand.vmem [shape: f32[1,96], index: 5, kind: input, shape index: {}]
  %s6 = inlined_call_operand.vmem [shape: f32[1,32], index: 6, kind: input, shape index: {}]
  %s7 = inlined_call_operand.vmem [shape: f32[1,32], index: 7, kind: input, shape index: {}]
  %s8 = inlined_call_operand.vmem [shape: f32[64,32], index: 8, kind: input, shape index: {}]
  %s9 = inlined_call_operand.vmem [shape: f32[1,32], index: 9, kind: input, shape index: {}]
  %s10 = inlined_call_operand.vmem [shape: f32[1,32], index: 10, kind: input, shape index: {}]
  %s11 = inlined_call_operand.vmem [shape: f32[1,32], index: 11, kind: input, shape index: {}]
  %s12 = inlined_call_operand.vmem [shape: f32[32,32], index: 12, kind: input, shape index: {}]
  %s13 = inlined_call_operand.vmem [shape: f32[1,32], index: 13, kind: input, shape index: {}]
  %s14 = inlined_call_operand.hbm [shape: f32[32,32], index: 14, kind: input, shape index: {}]
  %s15 = inlined_call_operand.vmem [shape: f32[1,32], index: 15, kind: input, shape index: {}]
  %s16 = inlined_call_operand.vmem [shape: f32[1,32], index: 16, kind: input, shape index: {}]
  %s17 = inlined_call_operand.vmem [shape: f32[1,32], index: 17, kind: input, shape index: {}]
  %s18 = inlined_call_operand.hbm [shape: f32[2,8,32], index: 18, kind: output, shape index: {0}]
  %s19 = inlined_call_operand.hbm [shape: f32[2,2,8,8], index: 19, kind: output, shape index: {1}]
  %20 = xla_tuple %s18, %s19
  %s21 = sld [smem:[#allocation0]]
  $region125: #{tpu_custom_call.1} parent=0
    _
  %s23 = ssub.s32 1, %s21
  %s24 = scalar_select 0, %s23, %s21
  %25 = sst [smem:[#allocation5]] %s0
  $region1: #{tpu_custom_call.1} parent=0
    #allocation6 [shape = 'u8[8192]{0}', space=vmem, size = 0x2000, scoped, tag = 'input window, operand 1']
    #allocation7 [shape = 's32[2]{0}', space=sflag, size = 0x8, scoped, tag = 'scoped memory for tpu_custom_call.1']
    #allocation8 [shape = 's32[2]{0}', space=sflag, size = 0x8, scoped, tag = 'scoped memory for tpu_custom_call.1']
    #allocation9 [shape = 'u8[16384]{0}', space=vmem, size = 0x4000, scoped, tag = 'input window, operand 14, single buffered']
    #allocation10 [shape = 's32[1]{0}', space=sflag, size = 0x4, scoped, tag = 'scoped memory for tpu_custom_call.1']
    #allocation11 [shape = 'u8[8192]{0}', space=vmem, size = 0x2000, scoped, tag = 'output window, operand 0']
    #allocation12 [shape = 'u8[16384]{0}', space=vmem, size = 0x4000, scoped, tag = 'output window, operand 1']
    #allocation13 [shape = 's32[2]{0}', space=sflag, size = 0x8, scoped, tag = 'scoped memory for tpu_custom_call.1']
    %26 = vsyncpa [#allocation7], 0
    %s27 = scalar_lea.sflag [#allocation7], 1
    %28 = vsyncpa %s27, 0
    %29 = vsyncpa [#allocation10], 0
    %30 = vsyncpa [#allocation8], 0
    %s31 = scalar_lea.sflag [#allocation8], 1
    %32 = vsyncpa %s31, 0
    %33 = vsyncpa [#allocation13], 0
    %s34 = scalar_lea.sflag [#allocation13], 1
    %35 = vsyncpa %s34, 0
    loop: start=0, step=1, limit=4
    $region2: #{tpu_custom_call.1} parent=1 // loop_pre_header
      _
    $region3: #{tpu_custom_call.1} parent=1 // loop_header
      %s37 = sphi 0, %s41
      %p38 = scmp.ge.s32.totalorder %s37, 4
      %s44 = sphi 0, %s56
      %s45 = sphi 0, %s52
      %s46 = sphi 0, %s44
      %s47 = sphi 0, %s45
      %s48 = sphi 0, %s46
      %s49 = sphi 0, %s47
      %s57 = sphi 0, %s57
      %s59 = sphi 0, %s57
      %s60 = sphi 0, %s59
      %s74 = sphi 0, %s60
      %s80 = sphi 0, %s82
      %s83 = sphi 0, %s80
      %s84 = sphi 0, %s83
      %s100 = sphi 0, %s84
      %s104 = sphi 0, %s104
      %s106 = sphi 0, %s104
      %s107 = sphi 0, %s106
      %s121 = sphi 0, %s107
      %s125 = sphi 0, %s125
      %s127 = sphi 0, %s125
      %s128 = sphi 0, %s127
      %s142 = sphi 0, %s128
      %s146 = sphi 0, %s146
      %s148 = sphi 0, %s146
      %s149 = sphi 0, %s148
      %s163 = sphi 0, %s149
      %s167 = sphi 0, %s167
      %s169 = sphi 0, %s167
      %s170 = sphi 0, %s169
      %s184 = sphi 0, %s170
      %s188 = sphi 0, %s188
      %s190 = sphi 0, %s188
      %s191 = sphi 0, %s190
      %s205 = sphi 0, %s191
      %s209 = sphi 0, %s209
      %s211 = sphi 0, %s209
      %s212 = sphi 0, %s211
      %s226 = sphi 0, %s212
      %s230 = sphi 0, %s230
      %s232 = sphi 0, %s230
      %s233 = sphi 0, %s232
      %s247 = sphi 0, %s233
      %s251 = sphi 0, %s251
      %s253 = sphi 0, %s251
      %s254 = sphi 0, %s253
      %s268 = sphi 0, %s254
      %s272 = sphi 0, %s272
      %s274 = sphi 0, %s272
      %s275 = sphi 0, %s274
      %s289 = sphi 0, %s275
      %s293 = sphi 0, %s293
      %s295 = sphi 0, %s293
      %s296 = sphi 0, %s295
      %s310 = sphi 0, %s296
      %s314 = sphi 0, %s314
      %s316 = sphi 0, %s314
      %s317 = sphi 0, %s316
      %s331 = sphi 0, %s317
      %s335 = sphi 0, %s335
      %s337 = sphi 0, %s335
      %s338 = sphi 0, %s337
      %s352 = sphi 0, %s338
      %s356 = sphi 0, %s356
      %s358 = sphi 0, %s356
      %s359 = sphi 0, %s358
      %s373 = sphi 0, %s359
      %s377 = sphi 0, %s377
      %s379 = sphi 0, %s377
      %s380 = sphi 0, %s379
      %s394 = sphi 0, %s380
      %s398 = sphi 0, %s398
      %s400 = sphi 0, %s398
      %s401 = sphi 0, %s400
      %s415 = sphi 0, %s401
      %s419 = sphi 0, %s419
      %s421 = sphi 0, %s419
      %s422 = sphi 0, %s421
      %s436 = sphi 0, %s422
      %s444 = sphi 0, %s446
      %s447 = sphi 0, %s444
      %s448 = sphi 0, %s447
      %s464 = sphi 0, %s448
      %s472 = sphi 0, %s474
      %s475 = sphi 0, %s472
      %s476 = sphi 0, %s475
      %s492 = sphi 0, %s476
    $region4: #{tpu_custom_call.1} parent=1 // loop_header_branch
      %40 = sbr.rel (%p38) target = $region8
    $region5: #{tpu_custom_call.1} parent=1 // loop_body
      %s42 = ssub.s32 %s37, 1
      %s43 = ssub.s32 %s37, 2
      %s50 = sadd.s32 1, %s45
      %p51 = scmp.ge.s32.totalorder %s50, 1
      %s52 = scalar_select %p51, 0, %s50
      %s53 = sadd.s32 1, %s44
      %s54 = scalar_select %p51, %s53, %s44
      %p55 = scmp.ge.s32.totalorder %s54, 2
      %s56 = scalar_select %p55, 0, %s54
      %s58 = sadd.s32 %s57, 1
      %p61 = scmp.eq.s32.totalorder %s37, 1
      %p62 = scmp.ne.s32.totalorder %s57, %s59
      %p63 = scmp.eq.s32.totalorder %s37, 0
      %p64 = por %p62, %p63
      %p65 = scmp.ne.s32.totalorder %s57, %s59
      %p66 = scmp.eq.s32.totalorder %s42, 1
      %p67 = por %p65, %p66
      %p68 = scmp.ne.s32.totalorder %s59, %s60
      %p69 = scmp.eq.s32.totalorder %s42, 0
      %p70 = por %p68, %p69
      %p71 = scmp.ne.s32.totalorder %s59, %s60
      %p72 = scmp.eq.s32.totalorder %s43, 1
      %p73 = por %p71, %p72
      %p75 = scmp.ne.s32.totalorder %s60, %s74
      %p76 = scmp.eq.s32.totalorder %s43, 0
      %p77 = por %p75, %p76
      %s78 = ssub.s32 %s44, %s56
      %p79 = scmp.eq.s32.totalorder %s78, 0
      %s81 = sadd.s32 %s80, 1
      %s82 = scalar_select %p79, %s80, %s81
      %p85 = pneg %p79
      %p86 = scmp.eq.s32.totalorder %s37, 1
      %p87 = por %p85, %p86
      %p88 = scmp.ne.s32.totalorder %s80, %s83
      %p89 = scmp.eq.s32.totalorder %s37, 0
      %p90 = por %p88, %p89
      %p91 = scmp.ne.s32.totalorder %s80, %s83
      %p92 = scmp.eq.s32.totalorder %s42, 1
      %p93 = por %p91, %p92
      %p94 = scmp.ne.s32.totalorder %s83, %s84
      %p95 = scmp.eq.s32.totalorder %s42, 0
      %p96 = por %p94, %p95
      %p97 = scmp.ne.s32.totalorder %s83, %s84
      %p98 = scmp.eq.s32.totalorder %s43, 1
      %p99 = por %p97, %p98
      %p101 = scmp.ne.s32.totalorder %s84, %s100
      %p102 = scmp.eq.s32.totalorder %s43, 0
      %p103 = por %p101, %p102
      %s105 = sadd.s32 %s104, 1
      %p108 = scmp.eq.s32.totalorder %s37, 1
      %p109 = scmp.ne.s32.totalorder %s104, %s106
      %p110 = scmp.eq.s32.totalorder %s37, 0
      %p111 = por %p109, %p110
      %p112 = scmp.ne.s32.totalorder %s104, %s106
      %p113 = scmp.eq.s32.totalorder %s42, 1
      %p114 = por %p112, %p113
      %p115 = scmp.ne.s32.totalorder %s106, %s107
      %p116 = scmp.eq.s32.totalorder %s42, 0
      %p117 = por %p115, %p116
      %p118 = scmp.ne.s32.totalorder %s106, %s107
      %p119 = scmp.eq.s32.totalorder %s43, 1
      %p120 = por %p118, %p119
      %p122 = scmp.ne.s32.totalorder %s107, %s121
      %p123 = scmp.eq.s32.totalorder %s43, 0
      %p124 = por %p122, %p123
      %s126 = sadd.s32 %s125, 1
      %p129 = scmp.eq.s32.totalorder %s37, 1
      %p130 = scmp.ne.s32.totalorder %s125, %s127
      %p131 = scmp.eq.s32.totalorder %s37, 0
      %p132 = por %p130, %p131
      %p133 = scmp.ne.s32.totalorder %s125, %s127
      %p134 = scmp.eq.s32.totalorder %s42, 1
      %p135 = por %p133, %p134
      %p136 = scmp.ne.s32.totalorder %s127, %s128
      %p137 = scmp.eq.s32.totalorder %s42, 0
      %p138 = por %p136, %p137
      %p139 = scmp.ne.s32.totalorder %s127, %s128
      %p140 = scmp.eq.s32.totalorder %s43, 1
      %p141 = por %p139, %p140
      %p143 = scmp.ne.s32.totalorder %s128, %s142
      %p144 = scmp.eq.s32.totalorder %s43, 0
      %p145 = por %p143, %p144
      %s147 = sadd.s32 %s146, 1
      %p150 = scmp.eq.s32.totalorder %s37, 1
      %p151 = scmp.ne.s32.totalorder %s146, %s148
      %p152 = scmp.eq.s32.totalorder %s37, 0
      %p153 = por %p151, %p152
      %p154 = scmp.ne.s32.totalorder %s146, %s148
      %p155 = scmp.eq.s32.totalorder %s42, 1
      %p156 = por %p154, %p155
      %p157 = scmp.ne.s32.totalorder %s148, %s149
      %p158 = scmp.eq.s32.totalorder %s42, 0
      %p159 = por %p157, %p158
      %p160 = scmp.ne.s32.totalorder %s148, %s149
      %p161 = scmp.eq.s32.totalorder %s43, 1
      %p162 = por %p160, %p161
      %p164 = scmp.ne.s32.totalorder %s149, %s163
      %p165 = scmp.eq.s32.totalorder %s43, 0
      %p166 = por %p164, %p165
      %s168 = sadd.s32 %s167, 1
      %p171 = scmp.eq.s32.totalorder %s37, 1
      %p172 = scmp.ne.s32.totalorder %s167, %s169
      %p173 = scmp.eq.s32.totalorder %s37, 0
      %p174 = por %p172, %p173
      %p175 = scmp.ne.s32.totalorder %s167, %s169
      %p176 = scmp.eq.s32.totalorder %s42, 1
      %p177 = por %p175, %p176
      %p178 = scmp.ne.s32.totalorder %s169, %s170
      %p179 = scmp.eq.s32.totalorder %s42, 0
      %p180 = por %p178, %p179
      %p181 = scmp.ne.s32.totalorder %s169, %s170
      %p182 = scmp.eq.s32.totalorder %s43, 1
      %p183 = por %p181, %p182
      %p185 = scmp.ne.s32.totalorder %s170, %s184
      %p186 = scmp.eq.s32.totalorder %s43, 0
      %p187 = por %p185, %p186
      %s189 = sadd.s32 %s188, 1
      %p192 = scmp.eq.s32.totalorder %s37, 1
      %p193 = scmp.ne.s32.totalorder %s188, %s190
      %p194 = scmp.eq.s32.totalorder %s37, 0
      %p195 = por %p193, %p194
      %p196 = scmp.ne.s32.totalorder %s188, %s190
      %p197 = scmp.eq.s32.totalorder %s42, 1
      %p198 = por %p196, %p197
      %p199 = scmp.ne.s32.totalorder %s190, %s191
      %p200 = scmp.eq.s32.totalorder %s42, 0
      %p201 = por %p199, %p200
      %p202 = scmp.ne.s32.totalorder %s190, %s191
      %p203 = scmp.eq.s32.totalorder %s43, 1
      %p204 = por %p202, %p203
      %p206 = scmp.ne.s32.totalorder %s191, %s205
      %p207 = scmp.eq.s32.totalorder %s43, 0
      %p208 = por %p206, %p207
      %s210 = sadd.s32 %s209, 1
      %p213 = scmp.eq.s32.totalorder %s37, 1
      %p214 = scmp.ne.s32.totalorder %s209, %s211
      %p215 = scmp.eq.s32.totalorder %s37, 0
      %p216 = por %p214, %p215
      %p217 = scmp.ne.s32.totalorder %s209, %s211
      %p218 = scmp.eq.s32.totalorder %s42, 1
      %p219 = por %p217, %p218
      %p220 = scmp.ne.s32.totalorder %s211, %s212
      %p221 = scmp.eq.s32.totalorder %s42, 0
      %p222 = por %p220, %p221
      %p223 = scmp.ne.s32.totalorder %s211, %s212
      %p224 = scmp.eq.s32.totalorder %s43, 1
      %p225 = por %p223, %p224
      %p227 = scmp.ne.s32.totalorder %s212, %s226
      %p228 = scmp.eq.s32.totalorder %s43, 0
      %p229 = por %p227, %p228
      %s231 = sadd.s32 %s230, 1
      %p234 = scmp.eq.s32.totalorder %s37, 1
      %p235 = scmp.ne.s32.totalorder %s230, %s232
      %p236 = scmp.eq.s32.totalorder %s37, 0
      %p237 = por %p235, %p236
      %p238 = scmp.ne.s32.totalorder %s230, %s232
      %p239 = scmp.eq.s32.totalorder %s42, 1
      %p240 = por %p238, %p239
      %p241 = scmp.ne.s32.totalorder %s232, %s233
      %p242 = scmp.eq.s32.totalorder %s42, 0
      %p243 = por %p241, %p242
      %p244 = scmp.ne.s32.totalorder %s232, %s233
      %p245 = scmp.eq.s32.totalorder %s43, 1
      %p246 = por %p244, %p245
      %p248 = scmp.ne.s32.totalorder %s233, %s247
      %p249 = scmp.eq.s32.totalorder %s43, 0
      %p250 = por %p248, %p249
      %s252 = sadd.s32 %s251, 1
      %p255 = scmp.eq.s32.totalorder %s37, 1
      %p256 = scmp.ne.s32.totalorder %s251, %s253
      %p257 = scmp.eq.s32.totalorder %s37, 0
      %p258 = por %p256, %p257
      %p259 = scmp.ne.s32.totalorder %s251, %s253
      %p260 = scmp.eq.s32.totalorder %s42, 1
      %p261 = por %p259, %p260
      %p262 = scmp.ne.s32.totalorder %s253, %s254
      %p263 = scmp.eq.s32.totalorder %s42, 0
      %p264 = por %p262, %p263
      %p265 = scmp.ne.s32.totalorder %s253, %s254
      %p266 = scmp.eq.s32.totalorder %s43, 1
      %p267 = por %p265, %p266
      %p269 = scmp.ne.s32.totalorder %s254, %s268
      %p270 = scmp.eq.s32.totalorder %s43, 0
      %p271 = por %p269, %p270
      %s273 = sadd.s32 %s272, 1
      %p276 = scmp.eq.s32.totalorder %s37, 1
      %p277 = scmp.ne.s32.totalorder %s272, %s274
      %p278 = scmp.eq.s32.totalorder %s37, 0
      %p279 = por %p277, %p278
      %p280 = scmp.ne.s32.totalorder %s272, %s274
      %p281 = scmp.eq.s32.totalorder %s42, 1
      %p282 = por %p280, %p281
      %p283 = scmp.ne.s32.totalorder %s274, %s275
      %p284 = scmp.eq.s32.totalorder %s42, 0
      %p285 = por %p283, %p284
      %p286 = scmp.ne.s32.totalorder %s274, %s275
      %p287 = scmp.eq.s32.totalorder %s43, 1
      %p288 = por %p286, %p287
      %p290 = scmp.ne.s32.totalorder %s275, %s289
      %p291 = scmp.eq.s32.totalorder %s43, 0
      %p292 = por %p290, %p291
      %s294 = sadd.s32 %s293, 1
      %p297 = scmp.eq.s32.totalorder %s37, 1
      %p298 = scmp.ne.s32.totalorder %s293, %s295
      %p299 = scmp.eq.s32.totalorder %s37, 0
      %p300 = por %p298, %p299
      %p301 = scmp.ne.s32.totalorder %s293, %s295
      %p302 = scmp.eq.s32.totalorder %s42, 1
      %p303 = por %p301, %p302
      %p304 = scmp.ne.s32.totalorder %s295, %s296
      %p305 = scmp.eq.s32.totalorder %s42, 0
      %p306 = por %p304, %p305
      %p307 = scmp.ne.s32.totalorder %s295, %s296
      %p308 = scmp.eq.s32.totalorder %s43, 1
      %p309 = por %p307, %p308
      %p311 = scmp.ne.s32.totalorder %s296, %s310
      %p312 = scmp.eq.s32.totalorder %s43, 0
      %p313 = por %p311, %p312
      %s315 = sadd.s32 %s314, 1
      %p318 = scmp.eq.s32.totalorder %s37, 1
      %p319 = scmp.ne.s32.totalorder %s314, %s316
      %p320 = scmp.eq.s32.totalorder %s37, 0
      %p321 = por %p319, %p320
      %p322 = scmp.ne.s32.totalorder %s314, %s316
      %p323 = scmp.eq.s32.totalorder %s42, 1
      %p324 = por %p322, %p323
      %p325 = scmp.ne.s32.totalorder %s316, %s317
      %p326 = scmp.eq.s32.totalorder %s42, 0
      %p327 = por %p325, %p326
      %p328 = scmp.ne.s32.totalorder %s316, %s317
      %p329 = scmp.eq.s32.totalorder %s43, 1
      %p330 = por %p328, %p329
      %p332 = scmp.ne.s32.totalorder %s317, %s331
      %p333 = scmp.eq.s32.totalorder %s43, 0
      %p334 = por %p332, %p333
      %s336 = sadd.s32 %s335, 1
      %p339 = scmp.eq.s32.totalorder %s37, 1
      %p340 = scmp.ne.s32.totalorder %s335, %s337
      %p341 = scmp.eq.s32.totalorder %s37, 0
      %p342 = por %p340, %p341
      %p343 = scmp.ne.s32.totalorder %s335, %s337
      %p344 = scmp.eq.s32.totalorder %s42, 1
      %p345 = por %p343, %p344
      %p346 = scmp.ne.s32.totalorder %s337, %s338
      %p347 = scmp.eq.s32.totalorder %s42, 0
      %p348 = por %p346, %p347
      %p349 = scmp.ne.s32.totalorder %s337, %s338
      %p350 = scmp.eq.s32.totalorder %s43, 1
      %p351 = por %p349, %p350
      %p353 = scmp.ne.s32.totalorder %s338, %s352
      %p354 = scmp.eq.s32.totalorder %s43, 0
      %p355 = por %p353, %p354
      %s357 = sadd.s32 %s356, 1
      %p360 = scmp.eq.s32.totalorder %s37, 1
      %p361 = scmp.ne.s32.totalorder %s356, %s358
      %p362 = scmp.eq.s32.totalorder %s37, 0
      %p363 = por %p361, %p362
      %p364 = scmp.ne.s32.totalorder %s356, %s358
      %p365 = scmp.eq.s32.totalorder %s42, 1
      %p366 = por %p364, %p365
      %p367 = scmp.ne.s32.totalorder %s358, %s359
      %p368 = scmp.eq.s32.totalorder %s42, 0
      %p369 = por %p367, %p368
      %p370 = scmp.ne.s32.totalorder %s358, %s359
      %p371 = scmp.eq.s32.totalorder %s43, 1
      %p372 = por %p370, %p371
      %p374 = scmp.ne.s32.totalorder %s359, %s373
      %p375 = scmp.eq.s32.totalorder %s43, 0
      %p376 = por %p374, %p375
      %s378 = sadd.s32 %s377, 1
      %p381 = scmp.eq.s32.totalorder %s37, 1
      %p382 = scmp.ne.s32.totalorder %s377, %s379
      %p383 = scmp.eq.s32.totalorder %s37, 0
      %p384 = por %p382, %p383
      %p385 = scmp.ne.s32.totalorder %s377, %s379
      %p386 = scmp.eq.s32.totalorder %s42, 1
      %p387 = por %p385, %p386
      %p388 = scmp.ne.s32.totalorder %s379, %s380
      %p389 = scmp.eq.s32.totalorder %s42, 0
      %p390 = por %p388, %p389
      %p391 = scmp.ne.s32.totalorder %s379, %s380
      %p392 = scmp.eq.s32.totalorder %s43, 1
      %p393 = por %p391, %p392
      %p395 = scmp.ne.s32.totalorder %s380, %s394
      %p396 = scmp.eq.s32.totalorder %s43, 0
      %p397 = por %p395, %p396
      %s399 = sadd.s32 %s398, 1
      %p402 = scmp.eq.s32.totalorder %s37, 1
      %p403 = scmp.ne.s32.totalorder %s398, %s400
      %p404 = scmp.eq.s32.totalorder %s37, 0
      %p405 = por %p403, %p404
      %p406 = scmp.ne.s32.totalorder %s398, %s400
      %p407 = scmp.eq.s32.totalorder %s42, 1
      %p408 = por %p406, %p407
      %p409 = scmp.ne.s32.totalorder %s400, %s401
      %p410 = scmp.eq.s32.totalorder %s42, 0
      %p411 = por %p409, %p410
      %p412 = scmp.ne.s32.totalorder %s400, %s401
      %p413 = scmp.eq.s32.totalorder %s43, 1
      %p414 = por %p412, %p413
      %p416 = scmp.ne.s32.totalorder %s401, %s415
      %p417 = scmp.eq.s32.totalorder %s43, 0
      %p418 = por %p416, %p417
      %s420 = sadd.s32 %s419, 1
      %p423 = scmp.eq.s32.totalorder %s37, 1
      %p424 = scmp.ne.s32.totalorder %s419, %s421
      %p425 = scmp.eq.s32.totalorder %s37, 0
      %p426 = por %p424, %p425
      %p427 = scmp.ne.s32.totalorder %s419, %s421
      %p428 = scmp.eq.s32.totalorder %s42, 1
      %p429 = por %p427, %p428
      %p430 = scmp.ne.s32.totalorder %s421, %s422
      %p431 = scmp.eq.s32.totalorder %s42, 0
      %p432 = por %p430, %p431
      %p433 = scmp.ne.s32.totalorder %s421, %s422
      %p434 = scmp.eq.s32.totalorder %s43, 1
      %p435 = por %p433, %p434
      %p437 = scmp.ne.s32.totalorder %s422, %s436
      %p438 = scmp.eq.s32.totalorder %s43, 0
      %p439 = por %p437, %p438
      %s440 = ssub.s32 %s44, %s56
      %s441 = ssub.s32 %s45, %s52
      %s442 = sor.u32 %s440, %s441
      %p443 = scmp.eq.s32.totalorder %s442, 0
      %s445 = sadd.s32 %s444, 1
      %s446 = scalar_select %p443, %s444, %s445
      %p449 = pneg %p443
      %p450 = scmp.eq.s32.totalorder %s37, 1
      %p451 = por %p449, %p450
      %p452 = scmp.ne.s32.totalorder %s444, %s447
      %p453 = scmp.eq.s32.totalorder %s37, 0
      %p454 = por %p452, %p453
      %p455 = scmp.ne.s32.totalorder %s444, %s447
      %p456 = scmp.eq.s32.totalorder %s42, 1
      %p457 = por %p455, %p456
      %p458 = scmp.ne.s32.totalorder %s447, %s448
      %p459 = scmp.eq.s32.totalorder %s42, 0
      %p460 = por %p458, %p459
      %p461 = scmp.ne.s32.totalorder %s447, %s448
      %p462 = scmp.eq.s32.totalorder %s43, 1
      %p463 = por %p461, %p462
      %p465 = scmp.ne.s32.totalorder %s448, %s464
      %p466 = scmp.eq.s32.totalorder %s43, 0
      %p467 = por %p465, %p466
      %s468 = ssub.s32 %s44, %s56
      %s469 = ssub.s32 %s45, %s52
      %s470 = sor.u32 %s468, %s469
      %p471 = scmp.eq.s32.totalorder %s470, 0
      %s473 = sadd.s32 %s472, 1
      %s474 = scalar_select %p471, %s472, %s473
      %p477 = pneg %p471
      %p478 = scmp.eq.s32.totalorder %s37, 1
      %p479 = por %p477, %p478
      %p480 = scmp.ne.s32.totalorder %s472, %s475
      %p481 = scmp.eq.s32.totalorder %s37, 0
      %p482 = por %p480, %p481
      %p483 = scmp.ne.s32.totalorder %s472, %s475
      %p484 = scmp.eq.s32.totalorder %s42, 1
      %p485 = por %p483, %p484
      %p486 = scmp.ne.s32.totalorder %s475, %s476
      %p487 = scmp.eq.s32.totalorder %s42, 0
      %p488 = por %p486, %p487
      %p489 = scmp.ne.s32.totalorder %s475, %s476
      %p490 = scmp.eq.s32.totalorder %s43, 1
      %p491 = por %p489, %p490
      %p493 = scmp.ne.s32.totalorder %s476, %s492
      %p494 = scmp.eq.s32.totalorder %s43, 0
      %p495 = por %p493, %p494
      %p496 = scmp.le.s32.totalorder 1, %s37
      %p497 = scmp.lt.s32.totalorder %s37, 3
      %p498 = pnand %p496, %p497
      %p499 = pneg %p498
      // Predicated region
      $region9: #{tpu_custom_call.1} parent=5 // pred_check
        _
      $region10: #{tpu_custom_call.1} parent=5 // pred_check_branch
        %501 = sbr.rel (%p498) target = $region12
      $region11: #{tpu_custom_call.1} parent=5 // pred_region
        %s502 = ssub.s32 %s37, 1
        // Predicated region
        $region13: #{tpu_custom_call.1} parent=11 // pred_check
          %p503 = pneg %p70
        $region14: #{tpu_custom_call.1} parent=11 // pred_check_branch
          %505 = sbr.rel (%p503) target = $region16
        $region15: #{tpu_custom_call.1} parent=11 // pred_region
          _
        $region16: #{tpu_custom_call.1} parent=11 // pred_fallthru
          _
        // Predicated region
        $region17: #{tpu_custom_call.1} parent=11 // pred_check
          %p506 = pneg %p117
        $region18: #{tpu_custom_call.1} parent=11 // pred_check_branch
          %508 = sbr.rel (%p506) target = $region20
        $region19: #{tpu_custom_call.1} parent=11 // pred_region
          _
        $region20: #{tpu_custom_call.1} parent=11 // pred_fallthru
          _
        // Predicated region
        $region21: #{tpu_custom_call.1} parent=11 // pred_check
          %p509 = pneg %p138
        $region22: #{tpu_custom_call.1} parent=11 // pred_check_branch
          %511 = sbr.rel (%p509) target = $region24
        $region23: #{tpu_custom_call.1} parent=11 // pred_region
          _
        $region24: #{tpu_custom_call.1} parent=11 // pred_fallthru
          _
        // Predicated region
        $region25: #{tpu_custom_call.1} parent=11 // pred_check
          %p512 = pneg %p159
        $region26: #{tpu_custom_call.1} parent=11 // pred_check_branch
          %514 = sbr.rel (%p512) target = $region28
        $region27: #{tpu_custom_call.1} parent=11 // pred_region
          _
        $region28: #{tpu_custom_call.1} parent=11 // pred_fallthru
          _
        // Predicated region
        $region29: #{tpu_custom_call.1} parent=11 // pred_check
          %p515 = pneg %p180
        $region30: #{tpu_custom_call.1} parent=11 // pred_check_branch
          %517 = sbr.rel (%p515) target = $region32
        $region31: #{tpu_custom_call.1} parent=11 // pred_region
          _
        $region32: #{tpu_custom_call.1} parent=11 // pred_fallthru
          _
        // Predicated region
        $region33: #{tpu_custom_call.1} parent=11 // pred_check
          %p518 = pneg %p201
        $region34: #{tpu_custom_call.1} parent=11 // pred_check_branch
          %520 = sbr.rel (%p518) target = $region36
        $region35: #{tpu_custom_call.1} parent=11 // pred_region
          _
        $region36: #{tpu_custom_call.1} parent=11 // pred_fallthru
          _
        // Predicated region
        $region37: #{tpu_custom_call.1} parent=11 // pred_check
          %p521 = pneg %p222
        $region38: #{tpu_custom_call.1} parent=11 // pred_check_branch
          %523 = sbr.rel (%p521) target = $region40
        $region39: #{tpu_custom_call.1} parent=11 // pred_region
          _
        $region40: #{tpu_custom_call.1} parent=11 // pred_fallthru
          _
        // Predicated region
        $region41: #{tpu_custom_call.1} parent=11 // pred_check
          %p524 = pneg %p243
        $region42: #{tpu_custom_call.1} parent=11 // pred_check_branch
          %526 = sbr.rel (%p524) target = $region44
        $region43: #{tpu_custom_call.1} parent=11 // pred_region
          _
        $region44: #{tpu_custom_call.1} parent=11 // pred_fallthru
          _
        // Predicated region
        $region45: #{tpu_custom_call.1} parent=11 // pred_check
          %p527 = pneg %p264
        $region46: #{tpu_custom_call.1} parent=11 // pred_check_branch
          %529 = sbr.rel (%p527) target = $region48
        $region47: #{tpu_custom_call.1} parent=11 // pred_region
          _
        $region48: #{tpu_custom_call.1} parent=11 // pred_fallthru
          _
        // Predicated region
        $region49: #{tpu_custom_call.1} parent=11 // pred_check
          %p530 = pneg %p285
        $region50: #{tpu_custom_call.1} parent=11 // pred_check_branch
          %532 = sbr.rel (%p530) target = $region52
        $region51: #{tpu_custom_call.1} parent=11 // pred_region
          _
        $region52: #{tpu_custom_call.1} parent=11 // pred_fallthru
          _
        // Predicated region
        $region53: #{tpu_custom_call.1} parent=11 // pred_check
          %p533 = pneg %p306
        $region54: #{tpu_custom_call.1} parent=11 // pred_check_branch
          %535 = sbr.rel (%p533) target = $region56
        $region55: #{tpu_custom_call.1} parent=11 // pred_region
          _
        $region56: #{tpu_custom_call.1} parent=11 // pred_fallthru
          _
        // Predicated region
        $region57: #{tpu_custom_call.1} parent=11 // pred_check
          %p536 = pneg %p327
        $region58: #{tpu_custom_call.1} parent=11 // pred_check_branch
          %538 = sbr.rel (%p536) target = $region60
        $region59: #{tpu_custom_call.1} parent=11 // pred_region
          _
        $region60: #{tpu_custom_call.1} parent=11 // pred_fallthru
          _
        // Predicated region
        $region61: #{tpu_custom_call.1} parent=11 // pred_check
          %p539 = pneg %p348
        $region62: #{tpu_custom_call.1} parent=11 // pred_check_branch
          %541 = sbr.rel (%p539) target = $region64
        $region63: #{tpu_custom_call.1} parent=11 // pred_region
          _
        $region64: #{tpu_custom_call.1} parent=11 // pred_fallthru
          _
        // Predicated region
        $region65: #{tpu_custom_call.1} parent=11 // pred_check
          %p542 = pneg %p369
        $region66: #{tpu_custom_call.1} parent=11 // pred_check_branch
          %544 = sbr.rel (%p542) target = $region68
        $region67: #{tpu_custom_call.1} parent=11 // pred_region
          %546 = vsyncadd [#allocation10], 0
          %s547 = sshll.u32 %s14, 4
          %s548 = int_to_ptr.hbm [resolvable:$true] %s547
          %s549 = sshll.u32 [#allocation9], 4
          %s550 = int_to_ptr.vmem [resolvable:$true] %s549
          %555 = dma.hbm_to_vmem [thread:$0]  %s548, 512, %s550, [#allocation10], 128, 128, 8
        $region68: #{tpu_custom_call.1} parent=11 // pred_fallthru
          _
        // Predicated region
        $region69: #{tpu_custom_call.1} parent=11 // pred_check
          %p556 = pneg %p390
        $region70: #{tpu_custom_call.1} parent=11 // pred_check_branch
          %558 = sbr.rel (%p556) target = $region72
        $region71: #{tpu_custom_call.1} parent=11 // pred_region
          _
        $region72: #{tpu_custom_call.1} parent=11 // pred_fallthru
          _
        // Predicated region
        $region73: #{tpu_custom_call.1} parent=11 // pred_check
          %p559 = pneg %p411
        $region74: #{tpu_custom_call.1} parent=11 // pred_check_branch
          %561 = sbr.rel (%p559) target = $region76
        $region75: #{tpu_custom_call.1} parent=11 // pred_region
          _
        $region76: #{tpu_custom_call.1} parent=11 // pred_fallthru
          _
        // Predicated region
        $region77: #{tpu_custom_call.1} parent=11 // pred_check
          %p562 = pneg %p432
        $region78: #{tpu_custom_call.1} parent=11 // pred_check_branch
          %564 = sbr.rel (%p562) target = $region80
        $region79: #{tpu_custom_call.1} parent=11 // pred_region
          _
        $region80: #{tpu_custom_call.1} parent=11 // pred_fallthru
          _
      $region12: #{tpu_custom_call.1} parent=5 // pred_fallthru
        _
      %p565 = scmp.lt.s32.totalorder %s37, 2
      // Predicated region
      $region81: #{tpu_custom_call.1} parent=5 // pred_check
        %p566 = pneg %p565
      $region82: #{tpu_custom_call.1} parent=5 // pred_check_branch
        %568 = sbr.rel (%p566) target = $region84
      $region83: #{tpu_custom_call.1} parent=5 // pred_region
        // Predicated region
        $region85: #{tpu_custom_call.1} parent=83 // pred_check
          %p569 = pneg %p90
        $region86: #{tpu_custom_call.1} parent=83 // pred_check_branch
          %571 = sbr.rel (%p569) target = $region88
        $region87: #{tpu_custom_call.1} parent=83 // pred_region
          %s572 = sand.u32 %s80, 1
          %s573 = scalar_lea.sflag [#allocation7], %s572
          %s574 = sand.u32 %s80, 1
          %s575 = smul.addr %s574, 8
          %s576 = scalar_lea.vmem [#allocation6], %s575
          %578 = vsyncadd %s573, 0
          %s579 = smul.addr %s44, 8
          %s580 = scalar_lea.hbm %s1, %s579
          %s582 = sshll.u32 %s580, 4
          %s583 = int_to_ptr.hbm [resolvable:$true] %s582
          %s584 = sshll.u32 %s576, 4
          %s585 = int_to_ptr.vmem [resolvable:$true] %s584
          %587 = dma.hbm_to_vmem [thread:$0]  %s583, 128, %s585, %s573
        $region88: #{tpu_custom_call.1} parent=83 // pred_fallthru
          _
      $region84: #{tpu_custom_call.1} parent=5 // pred_fallthru
        _
      %p588 = scmp.le.s32.totalorder 1, %s37
      %p589 = scmp.lt.s32.totalorder %s37, 3
      %p590 = pnand %p588, %p589
      %p591 = pneg %p590
      // Predicated region
      $region89: #{tpu_custom_call.1} parent=5 // pred_check
        _
      $region90: #{tpu_custom_call.1} parent=5 // pred_check_branch
        %593 = sbr.rel (%p590) target = $region92
      $region91: #{tpu_custom_call.1} parent=5 // pred_region
        %s594 = ssub.s32 %s37, 1
        %s595 = sand.u32 %s83, 1
        %s596 = scalar_lea.sflag [#allocation7], %s595
        %s597 = sand.u32 %s83, 1
        %s598 = smul.addr %s597, 8
        %s599 = scalar_lea.vmem [#allocation6], %s598
        // Predicated region
        $region93: #{tpu_custom_call.1} parent=91 // pred_check
          %p600 = pneg %p96
        $region94: #{tpu_custom_call.1} parent=91 // pred_check_branch
          %602 = sbr.rel (%p600) target = $region96
        $region95: #{tpu_custom_call.1} parent=91 // pred_region
          %604 = dma.done %s596, 128
        $region96: #{tpu_custom_call.1} parent=91 // pred_fallthru
          _
        // Predicated region
        $region97: #{tpu_custom_call.1} parent=91 // pred_check
          %p605 = pneg %p369
        $region98: #{tpu_custom_call.1} parent=91 // pred_check_branch
          %607 = sbr.rel (%p605) target = $region100
        $region99: #{tpu_custom_call.1} parent=91 // pred_region
          %609 = dma.done [#allocation10], 512
        $region100: #{tpu_custom_call.1} parent=91 // pred_fallthru
          _
        %p610 = pneg %p70
        %p611 = pneg %p67
        %s612 = sand.u32 %s83, 1
        %s613 = scalar_lea.sflag [#allocation7], %s612
        %s614 = sand.u32 %s83, 1
        %s615 = smul.addr %s614, 8
        %s616 = scalar_lea.vmem [#allocation6], %s615
        %p617 = pneg %p96
        %p618 = pneg %p93
        %p619 = pneg %p117
        %p620 = pneg %p114
        %p621 = pneg %p138
        %p622 = pneg %p135
        %p623 = pneg %p159
        %p624 = pneg %p156
        %p625 = pneg %p180
        %p626 = pneg %p177
        %p627 = pneg %p201
        %p628 = pneg %p198
        %p629 = pneg %p222
        %p630 = pneg %p219
        %p631 = pneg %p243
        %p632 = pneg %p240
        %p633 = pneg %p264
        %p634 = pneg %p261
        %p635 = pneg %p285
        %p636 = pneg %p282
        %p637 = pneg %p306
        %p638 = pneg %p303
        %p639 = pneg %p327
        %p640 = pneg %p324
        %p641 = pneg %p348
        %p642 = pneg %p345
        %p643 = pneg %p369
        %p644 = pneg %p366
        %p645 = pneg %p390
        %p646 = pneg %p387
        %p647 = pneg %p411
        %p648 = pneg %p408
        %p649 = pneg %p432
        %p650 = pneg %p429
        %p651 = pneg %p460
        %p652 = pneg %p457
        %s653 = sand.u32 %s447, 1
        %s654 = scalar_lea.sflag [#allocation8], %s653
        %s655 = sand.u32 %s447, 1
        %s656 = smul.addr %s655, 8
        %s657 = scalar_lea.vmem [#allocation11], %s656
        %p658 = pneg %p488
        %p659 = pneg %p485
        %s660 = sand.u32 %s475, 1
        %s661 = scalar_lea.sflag [#allocation13], %s660
        %s662 = sand.u32 %s475, 1
        %s663 = smul.addr %s662, 16
        %s664 = scalar_lea.vmem [#allocation12], %s663
        %s665 = smul.u32 %s47, 8
        %s666 = sld [smem:[#allocation5]]
        %p667 = scmp.eq.s32.totalorder %s47, 0
        // Predicated region
        $region101: #{tpu_custom_call.1} parent=91 // pred_check
          %p668 = pneg %p667
        $region102: #{tpu_custom_call.1} parent=91 // pred_check_branch
          %670 = sbr.rel (%p668) target = $region104
        $region103: #{tpu_custom_call.1} parent=91 // pred_region
          %v671 = vld [vmem:[%s599] sm:$0xff]
          %v672 = vld [vmem:[%s4] sm:$0xff]
          %v673 = vld [vmem:[%s4 + $0x8] sm:$0xff]
          %v674 = vld [vmem:[%s4 + $0x10] sm:$0xff]
          %v675 = vld [vmem:[%s4 + $0x18] sm:$0xff]
          %v676 = vld [vmem:[%s5] sm:$0x1]
          %v678 = vperm.slane %v676, 0
          %vm680 = vcmask 261120
          %v682 = vsel %vm680, %v671, 0
          %684 = vmatpush.msra.mxu0 0.0
          %685 = vmatpush.msra.mxu0 0.0
          %686 = vmatpush.msra.mxu0 0.0
          %687 = vmatpush.msra.mxu0 0.0
          %688 = vmatpush.msra.mxu0 0.0
          %689 = vmatpush.msra.mxu0 0.0
          %690 = vmatpush.msra.mxu0 0.0
          %691 = vmatpush.msra.mxu0 0.0
          %692 = vmatpush.msra.mxu0 0.0
          %693 = vmatpush.msra.mxu0 0.0
          %694 = vmatpush.msra.mxu0 0.0
          %695 = vmatpush.msra.mxu0 0.0
          %696 = vmatpush.msra.mxu0 %v675
          %697 = vmatpush.msra.mxu0 %v674
          %698 = vmatpush.msra.mxu0 %v673
          %699 = vmatpush.msra.mxu0 %v672
          %700 = vmatmul.f32.gmra.mxu0 %v682
          %v701 = vpop.f32.mrf.mxu0
          %v702 = vadd.f32 %v678, %v701
          %703 = vdwg.mxu0
          %vm704 = vcmask 785408
          %705 = vst.msk [vmem:[#allocation2] sm:$0xff] %vm704, %v702
        $region104: #{tpu_custom_call.1} parent=91 // pred_fallthru
          _
        %s706 = scalar_lea.vmem %s599, %s665 [#allocation6]
        %v707 = vld [vmem:[%s706] sm:$0xff]
        %v708 = vld [vmem:[%s2] sm:$0xff]
        %v709 = vld [vmem:[%s2 + $0x8] sm:$0xff]
        %v710 = vld [vmem:[%s2 + $0x10] sm:$0xff]
        %v711 = vld [vmem:[%s2 + $0x18] sm:$0xff]
        %v712 = vld [vmem:[%s3] sm:$0x1]
        %v714 = vperm.slane %v712, 0
        %vm716 = vcmask 261120
        %v718 = vsel %vm716, %v707, 0
        %720 = vmatpush.msra.mxu0 0.0
        %721 = vmatpush.msra.mxu0 0.0
        %722 = vmatpush.msra.mxu0 0.0
        %723 = vmatpush.msra.mxu0 0.0
        %724 = vmatpush.msra.mxu0 0.0
        %725 = vmatpush.msra.mxu0 0.0
        %726 = vmatpush.msra.mxu0 0.0
        %727 = vmatpush.msra.mxu0 0.0
        %728 = vmatpush.msra.mxu0 0.0
        %729 = vmatpush.msra.mxu0 0.0
        %730 = vmatpush.msra.mxu0 0.0
        %731 = vmatpush.msra.mxu0 0.0
        %732 = vmatpush.msra.mxu0 %v711
        %733 = vmatpush.msra.mxu0 %v710
        %734 = vmatpush.msra.mxu0 %v709
        %735 = vmatpush.msra.mxu0 %v708
        %736 = vmatmul.f32.gmra.mxu0 %v718
        %v737 = vpop.f32.mrf.mxu0
        %v738 = vadd.f32 %v714, %v737
        %739 = vdwg.mxu0
        %740 = vst.msk [vmem:[#allocation3] sm:$0xff] %vm716, %v738
        %v741 = vld [vmem:[%s6] sm:$0x1]
        %v742 = vld [vmem:[%s7] sm:$0x1]
        %v743 = vld [vmem:[#allocation3] sm:$0xff]
        %v744 = vld [vmem:[#allocation2] sm:$0xff]
        %vm745 = vcmask 130048
        %v747 = vsel %vm745, %v743, 0
        %v750 = vsel %vm745, %v744, 0
        %752 = vmatpush.xpose.msra.mxu0 0.0
        %753 = vmatpush.xpose.msra.mxu0 0.0
        %754 = vmatpush.xpose.msra.mxu0 0.0
        %755 = vmatpush.xpose.msra.mxu0 0.0
        %756 = vmatpush.xpose.msra.mxu0 0.0
        %757 = vmatpush.xpose.msra.mxu0 0.0
        %758 = vmatpush.xpose.msra.mxu0 0.0
        %759 = vmatpush.xpose.msra.mxu0 0.0
        %760 = vmatpush.xpose.msra.mxu0 0.0
        %761 = vmatpush.xpose.msra.mxu0 0.0
        %762 = vmatpush.xpose.msra.mxu0 0.0
        %763 = vmatpush.xpose.msra.mxu0 0.0
        %764 = vmatpush.xpose.msra.mxu0 0.0
        %765 = vmatpush.xpose.msra.mxu0 0.0
        %766 = vmatpush.xpose.msra.mxu0 0.0
        %767 = vmatpush.xpose.msra.mxu0 %v750
        %768 = vmatmul.f32.gmra.mxu0 %v747
        %v769 = vpop.f32.mrf.mxu0
        %v770 = vadd.f32 0.0, %v769
        %771 = vdwg.mxu0
        %vm772 = vcmask 64512
        %v773 = vsel %vm772, %v770, -inf
        %774 = vmax.xlane.f32.xlu0 %v773
        %v775 = vpop.xlane.xlu0 %774
        %v776 = vsub.f32 %v770, %v775
        %v777 = vmul.f32 %v776, 1.442695
        %v778 = vpow.pop %v777
        %v779 = vsel %vm772, %v778, 0.0
        %780 = vadd.xlane.f32.xlu0 %v779
        %v781 = vpop.xlane.xlu0 %780
        %v782 = vstv %s666
        %v783 = vrcp.pop %v781
        %v784 = vmul.f32 %v781, %v783
        %v785 = vsub.f32 1.0, %v784
        %v786 = vmul.f32 %v783, %v785
        %v787 = vadd.f32 %v783, %v786
        %vm788 = vweird.f32 %v781
        %vm789 = vweird.f32 %v783
        %vm790 = vmor %vm788, %vm789
        %v791 = vsel %vm790, %v783, %v787
        %v792 = vand.u32 2147483647, %v781
        %vm793 = vcmp.eq.f32.partialorder %v792, 8.507059e+37
        %v794 = vand.u32 %v781, 2147483648
        %v795 = vor.u32 1.1754944e-38, %v794
        %v796 = vsel %vm793, %v795, %v791
        %v797 = vmul.f32 %v782, %v796
        %v798 = vmul.f32 %v778, %v797
        %799 = vst.msk [vmem:[%s664] sm:$0xff] %vm772, %v798
        %800 = vrot.lane.b32.xlu0 %v744, 112
        %v801 = vpop.permute.xlu0 %800
        %v804 = vsel %vm772, %v798, 0
        %806 = vmatpush.msra.mxu0 0.0
        %807 = vmatpush.msra.mxu0 0.0
        %808 = vmatpush.msra.mxu0 0.0
        %809 = vmatpush.msra.mxu0 0.0
        %810 = vmatpush.msra.mxu0 0.0
        %811 = vmatpush.msra.mxu0 0.0
        %812 = vmatpush.msra.mxu0 0.0
        %813 = vmatpush.msra.mxu0 0.0
        %814 = vmatpush.msra.mxu0 0.0
        %815 = vmatpush.msra.mxu0 0.0
        %816 = vmatpush.msra.mxu0 0.0
        %817 = vmatpush.msra.mxu0 0.0
        %818 = vmatpush.msra.mxu0 0.0
        %819 = vmatpush.msra.mxu0 0.0
        %820 = vmatpush.msra.mxu0 0.0
        %821 = vmatpush.msra.mxu0 %v801
        %822 = vmatmul.f32.gmra.mxu0 %v804
        %v823 = vpop.f32.mrf.mxu0
        %v824 = vadd.f32 0.0, %v823
        %825 = vdwg.mxu0
        %v826 = vsel %vm716, %v824, 0.0
        %827 = vadd.xlane.f32.xlu0 %v826
        %v828 = vpop.xlane.xlu0 %827
        %v829 = vrcp.pop 32.0
        %v830 = vmul.f32 32.0, %v829
        %v831 = vsub.f32 1.0, %v830
        %v832 = vmul.f32 %v829, %v831
        %v833 = vadd.f32 %v829, %v832
        %vm834 = vweird.f32 %v829
        %v835 = vsel %vm834, %v829, %v833
        %v836 = vmul.f32 %v828, %v835
        %v837 = vsub.f32 %v824, %v836
        %v838 = vmul.f32 %v837, %v837
        %v839 = vsel %vm716, %v838, 0.0
        %840 = vadd.xlane.f32.xlu0 %v839
        %v841 = vpop.xlane.xlu0 %840
        %v842 = vmul.f32 %v841, %v835
        %v843 = vadd.f32 %v842, 1e-05
        %v844 = vrsqrt.pop %v843
        %v845 = vmul.f32 %v844, %v843
        %v846 = vmul.f32 %v845, %v844
        %v847 = vmul.f32 0.5, %v846
        %v848 = vsub.f32 1.5, %v847
        %v849 = vmul.f32 %v844, %v848
        %vm850 = vweird.f32 %v843
        %vm851 = vweird.f32 %v844
        %vm852 = vmor %vm850, %vm851
        %v853 = vsel %vm852, %v844, %v849
        %v854 = vmul.f32 %v837, %v853
        %v856 = vperm.slane %v741, 0
        %v858 = vmul.f32 %v854, %v856
        %v860 = vperm.slane %v742, 0
        %v862 = vadd.f32 %v858, %v860
        %863 = vst.msk [vmem:[#allocation4] sm:$0xff] %vm716, %v862
        %v864 = vld [vmem:[#allocation3] sm:$0xff]
        %v865 = vld [vmem:[#allocation2] sm:$0xff]
        %867 = vrot.lane.b32.xlu0 %v864, 112
        %v868 = vpop.permute.xlu0 %867
        %870 = vrot.lane.b32.xlu0 %v865, 80
        %v871 = vpop.permute.xlu0 %870
        %v872 = vsel %vm745, %v868, 0
        %v874 = vsel %vm745, %v871, 0
        %876 = vmatpush.xpose.msra.mxu0 0.0
        %877 = vmatpush.xpose.msra.mxu0 0.0
        %878 = vmatpush.xpose.msra.mxu0 0.0
        %879 = vmatpush.xpose.msra.mxu0 0.0
        %880 = vmatpush.xpose.msra.mxu0 0.0
        %881 = vmatpush.xpose.msra.mxu0 0.0
        %882 = vmatpush.xpose.msra.mxu0 0.0
        %883 = vmatpush.xpose.msra.mxu0 0.0
        %884 = vmatpush.xpose.msra.mxu0 0.0
        %885 = vmatpush.xpose.msra.mxu0 0.0
        %886 = vmatpush.xpose.msra.mxu0 0.0
        %887 = vmatpush.xpose.msra.mxu0 0.0
        %888 = vmatpush.xpose.msra.mxu0 0.0
        %889 = vmatpush.xpose.msra.mxu0 0.0
        %890 = vmatpush.xpose.msra.mxu0 0.0
        %891 = vmatpush.xpose.msra.mxu0 %v874
        %892 = vmatmul.f32.gmra.mxu0 %v872
        %v893 = vpop.f32.mrf.mxu0
        %v894 = vadd.f32 0.0, %v893
        %895 = vdwg.mxu0
        %v896 = vsel %vm772, %v894, -inf
        %897 = vmax.xlane.f32.xlu0 %v896
        %v898 = vpop.xlane.xlu0 %897
        %v899 = vsub.f32 %v894, %v898
        %v900 = vmul.f32 %v899, 1.442695
        %v901 = vpow.pop %v900
        %v902 = vsel %vm772, %v901, 0.0
        %903 = vadd.xlane.f32.xlu0 %v902
        %v904 = vpop.xlane.xlu0 %903
        %v905 = vrcp.pop %v904
        %v906 = vmul.f32 %v904, %v905
        %v907 = vsub.f32 1.0, %v906
        %v908 = vmul.f32 %v905, %v907
        %v909 = vadd.f32 %v905, %v908
        %vm910 = vweird.f32 %v904
        %vm911 = vweird.f32 %v905
        %vm912 = vmor %vm910, %vm911
        %v913 = vsel %vm912, %v905, %v909
        %v914 = vand.u32 2147483647, %v904
        %vm915 = vcmp.eq.f32.partialorder %v914, 8.507059e+37
        %v916 = vand.u32 %v904, 2147483648
        %v917 = vor.u32 1.1754944e-38, %v916
        %v918 = vsel %vm915, %v917, %v913
        %v919 = vmul.f32 %v782, %v918
        %v920 = vmul.f32 %v901, %v919
        %s921 = scalar_lea.vmem %s664, 8 [#allocation12]
        %922 = vst.msk [vmem:[%s921] sm:$0xff] %vm772, %v920
        %923 = vrot.lane.b32.xlu0 %v865, 64
        %v924 = vpop.permute.xlu0 %923
        %v927 = vsel %vm772, %v920, 0
        %929 = vmatpush.msra.mxu0 0.0
        %930 = vmatpush.msra.mxu0 0.0
        %931 = vmatpush.msra.mxu0 0.0
        %932 = vmatpush.msra.mxu0 0.0
        %933 = vmatpush.msra.mxu0 0.0
        %934 = vmatpush.msra.mxu0 0.0
        %935 = vmatpush.msra.mxu0 0.0
        %936 = vmatpush.msra.mxu0 0.0
        %937 = vmatpush.msra.mxu0 0.0
        %938 = vmatpush.msra.mxu0 0.0
        %939 = vmatpush.msra.mxu0 0.0
        %940 = vmatpush.msra.mxu0 0.0
        %941 = vmatpush.msra.mxu0 0.0
        %942 = vmatpush.msra.mxu0 0.0
        %943 = vmatpush.msra.mxu0 0.0
        %944 = vmatpush.msra.mxu0 %v924
        %945 = vmatmul.f32.gmra.mxu0 %v927
        %v946 = vpop.f32.mrf.mxu0
        %v947 = vadd.f32 0.0, %v946
        %948 = vdwg.mxu0
        %v949 = vsel %vm716, %v947, 0.0
        %950 = vadd.xlane.f32.xlu0 %v949
        %v951 = vpop.xlane.xlu0 %950
        %v952 = vmul.f32 %v951, %v835
        %v953 = vsub.f32 %v947, %v952
        %v954 = vmul.f32 %v953, %v953
        %v955 = vsel %vm716, %v954, 0.0
        %956 = vadd.xlane.f32.xlu0 %v955
        %v957 = vpop.xlane.xlu0 %956
        %v958 = vmul.f32 %v957, %v835
        %v959 = vadd.f32 %v958, 1e-05
        %v960 = vrsqrt.pop %v959
        %v961 = vmul.f32 %v960, %v959
        %v962 = vmul.f32 %v961, %v960
        %v963 = vmul.f32 0.5, %v962
        %v964 = vsub.f32 1.5, %v963
        %v965 = vmul.f32 %v960, %v964
        %vm966 = vweird.f32 %v959
        %vm967 = vweird.f32 %v960
        %vm968 = vmor %vm966, %vm967
        %v969 = vsel %vm968, %v960, %v965
        %v970 = vmul.f32 %v953, %v969
        %v971 = vmul.f32 %v970, %v856
        %v972 = vadd.f32 %v971, %v860
        %974 = vrot.lane.b32.xlu0 %v972, 32
        %v975 = vpop.permute.xlu0 %974
        %vm977 = vcmask 523520
        %978 = vst.msk [vmem:[#allocation4] sm:$0xff] %vm977, %v975
        %v979 = vld [vmem:[#allocation4] sm:$0xff]
        %v980 = vld [vmem:[%s8] sm:$0xff]
        %v981 = vld [vmem:[%s8 + $0x8] sm:$0xff]
        %v982 = vld [vmem:[%s8 + $0x10] sm:$0xff]
        %v983 = vld [vmem:[%s8 + $0x18] sm:$0xff]
        %v984 = vld [vmem:[%s8 + $0x20] sm:$0xff]
        %v985 = vld [vmem:[%s8 + $0x28] sm:$0xff]
        %v986 = vld [vmem:[%s8 + $0x30] sm:$0xff]
        %v987 = vld [vmem:[%s8 + $0x38] sm:$0xff]
        %v988 = vld [vmem:[%s9] sm:$0x1]
        %v990 = vperm.slane %v988, 0
        %vm992 = vcmask 523264
        %v994 = vsel %vm992, %v979, 0
        %996 = vmatpush.msra.mxu0 0.0
        %997 = vmatpush.msra.mxu0 0.0
        %998 = vmatpush.msra.mxu0 0.0
        %999 = vmatpush.msra.mxu0 0.0
        %1000 = vmatpush.msra.mxu0 0.0
        %1001 = vmatpush.msra.mxu0 0.0
        %1002 = vmatpush.msra.mxu0 0.0
        %1003 = vmatpush.msra.mxu0 0.0
        %1004 = vmatpush.msra.mxu0 %v987
        %1005 = vmatpush.msra.mxu0 %v986
        %1006 = vmatpush.msra.mxu0 %v985
        %1007 = vmatpush.msra.mxu0 %v984
        %1008 = vmatpush.msra.mxu0 %v983
        %1009 = vmatpush.msra.mxu0 %v982
        %1010 = vmatpush.msra.mxu0 %v981
        %1011 = vmatpush.msra.mxu0 %v980
        %1012 = vmatmul.f32.gmra.mxu0 %v994
        %v1013 = vpop.f32.mrf.mxu0
        %v1014 = vadd.f32 %v990, %v1013
        %1015 = vdwg.mxu0
        %v1016 = vadd.f32 %v707, %v1014
        %v1017 = vld [vmem:[%s10] sm:$0x1]
        %v1018 = vld [vmem:[%s11] sm:$0x1]
        %v1019 = vsel %vm716, %v1016, 0.0
        %1020 = vadd.xlane.f32.xlu0 %v1019
        %v1021 = vpop.xlane.xlu0 %1020
        %v1022 = vmul.f32 %v1021, %v835
        %v1023 = vsub.f32 %v1016, %v1022
        %v1024 = vmul.f32 %v1023, %v1023
        %v1025 = vsel %vm716, %v1024, 0.0
        %1026 = vadd.xlane.f32.xlu0 %v1025
        %v1027 = vpop.xlane.xlu0 %1026
        %v1028 = vmul.f32 %v1027, %v835
        %v1029 = vadd.f32 %v1028, 1e-05
        %v1030 = vrsqrt.pop %v1029
        %v1031 = vmul.f32 %v1030, %v1029
        %v1032 = vmul.f32 %v1031, %v1030
        %v1033 = vmul.f32 0.5, %v1032
        %v1034 = vsub.f32 1.5, %v1033
        %v1035 = vmul.f32 %v1030, %v1034
        %vm1036 = vweird.f32 %v1029
        %vm1037 = vweird.f32 %v1030
        %vm1038 = vmor %vm1036, %vm1037
        %v1039 = vsel %vm1038, %v1030, %v1035
        %v1040 = vmul.f32 %v1023, %v1039
        %v1042 = vperm.slane %v1017, 0
        %v1044 = vmul.f32 %v1040, %v1042
        %v1046 = vperm.slane %v1018, 0
        %v1048 = vadd.f32 %v1044, %v1046
        %v1049 = vld [vmem:[%s12] sm:$0xff]
        %v1050 = vld [vmem:[%s12 + $0x8] sm:$0xff]
        %v1051 = vld [vmem:[%s12 + $0x10] sm:$0xff]
        %v1052 = vld [vmem:[%s12 + $0x18] sm:$0xff]
        %v1053 = vld [vmem:[%s13] sm:$0x1]
        %v1055 = vperm.slane %v1053, 0
        %v1058 = vsel %vm716, %v1048, 0
        %1060 = vmatpush.msra.mxu0 0.0
        %1061 = vmatpush.msra.mxu0 0.0
        %1062 = vmatpush.msra.mxu0 0.0
        %1063 = vmatpush.msra.mxu0 0.0
        %1064 = vmatpush.msra.mxu0 0.0
        %1065 = vmatpush.msra.mxu0 0.0
        %1066 = vmatpush.msra.mxu0 0.0
        %1067 = vmatpush.msra.mxu0 0.0
        %1068 = vmatpush.msra.mxu0 0.0
        %1069 = vmatpush.msra.mxu0 0.0
        %1070 = vmatpush.msra.mxu0 0.0
        %1071 = vmatpush.msra.mxu0 0.0
        %1072 = vmatpush.msra.mxu0 %v1052
        %1073 = vmatpush.msra.mxu0 %v1051
        %1074 = vmatpush.msra.mxu0 %v1050
        %1075 = vmatpush.msra.mxu0 %v1049
        %1076 = vmatmul.f32.gmra.mxu0 %v1058
        %v1077 = vpop.f32.mrf.mxu0
        %v1078 = vadd.f32 %v1055, %v1077
        %1079 = vdwg.mxu0
        %v1080 = vmax.f32 %v1078, 0.0
        %v1081 = vld [vmem:[#allocation9] sm:$0xff]
        %v1082 = vld [vmem:[#allocation9 + $0x8] sm:$0xff]
        %v1083 = vld [vmem:[#allocation9 + $0x10] sm:$0xff]
        %v1084 = vld [vmem:[#allocation9 + $0x18] sm:$0xff]
        %v1085 = vld [vmem:[%s15] sm:$0x1]
        %v1087 = vperm.slane %v1085, 0
        %v1090 = vsel %vm716, %v1080, 0
        %1092 = vmatpush.msra.mxu0 0.0
        %1093 = vmatpush.msra.mxu0 0.0
        %1094 = vmatpush.msra.mxu0 0.0
        %1095 = vmatpush.msra.mxu0 0.0
        %1096 = vmatpush.msra.mxu0 0.0
        %1097 = vmatpush.msra.mxu0 0.0
        %1098 = vmatpush.msra.mxu0 0.0
        %1099 = vmatpush.msra.mxu0 0.0
        %1100 = vmatpush.msra.mxu0 0.0
        %1101 = vmatpush.msra.mxu0 0.0
        %1102 = vmatpush.msra.mxu0 0.0
        %1103 = vmatpush.msra.mxu0 0.0
        %1104 = vmatpush.msra.mxu0 %v1084
        %1105 = vmatpush.msra.mxu0 %v1083
        %1106 = vmatpush.msra.mxu0 %v1082
        %1107 = vmatpush.msra.mxu0 %v1081
        %1108 = vmatmul.f32.gmra.mxu0 %v1090
        %v1109 = vpop.f32.mrf.mxu0
        %v1110 = vadd.f32 %v1087, %v1109
        %1111 = vdwg.mxu0
        %v1112 = vadd.f32 %v1048, %v1110
        %v1113 = vld [vmem:[%s16] sm:$0x1]
        %v1114 = vld [vmem:[%s17] sm:$0x1]
        %v1115 = vsel %vm716, %v1112, 0.0
        %1116 = vadd.xlane.f32.xlu0 %v1115
        %v1117 = vpop.xlane.xlu0 %1116
        %v1118 = vmul.f32 %v1117, %v835
        %v1119 = vsub.f32 %v1112, %v1118
        %v1120 = vmul.f32 %v1119, %v1119
        %v1121 = vsel %vm716, %v1120, 0.0
        %1122 = vadd.xlane.f32.xlu0 %v1121
        %v1123 = vpop.xlane.xlu0 %1122
        %v1124 = vmul.f32 %v1123, %v835
        %v1125 = vadd.f32 %v1124, 1e-05
        %v1126 = vrsqrt.pop %v1125
        %v1127 = vmul.f32 %v1126, %v1125
        %v1128 = vmul.f32 %v1127, %v1126
        %v1129 = vmul.f32 0.5, %v1128
        %v1130 = vsub.f32 1.5, %v1129
        %v1131 = vmul.f32 %v1126, %v1130
        %vm1132 = vweird.f32 %v1125
        %vm1133 = vweird.f32 %v1126
        %vm1134 = vmor %vm1132, %vm1133
        %v1135 = vsel %vm1134, %v1126, %v1131
        %v1136 = vmul.f32 %v1119, %v1135
        %v1138 = vperm.slane %v1113, 0
        %v1140 = vmul.f32 %v1136, %v1138
        %v1142 = vperm.slane %v1114, 0
        %v1144 = vadd.f32 %v1140, %v1142
        %1145 = vst.msk [vmem:[%s657] sm:$0xff] %vm716, %v1144
        %s1146 = sand.u32 %s447, 1
        %s1147 = scalar_lea.sflag [#allocation8], %s1146
        %s1148 = sand.u32 %s447, 1
        %s1149 = smul.addr %s1148, 8
        %s1150 = scalar_lea.vmem [#allocation11], %s1149
        %s1151 = sand.u32 %s475, 1
        %s1152 = scalar_lea.sflag [#allocation13], %s1151
        %s1153 = sand.u32 %s475, 1
        %s1154 = smul.addr %s1153, 16
        %s1155 = scalar_lea.vmem [#allocation12], %s1154
        // Predicated region
        $region105: #{tpu_custom_call.1} parent=91 // pred_check
          %p1156 = pneg %p457
        $region106: #{tpu_custom_call.1} parent=91 // pred_check_branch
          %1158 = sbr.rel (%p1156) target = $region108
        $region107: #{tpu_custom_call.1} parent=91 // pred_region
          %1160 = vsyncadd %s1147, 0
          %s1161 = sadd.s32 %s47, %s46
          %s1162 = smul.addr %s1161, 8
          %s1163 = scalar_lea.hbm %s18, %s1162
          %s1165 = sshll.u32 %s1150, 4
          %s1166 = int_to_ptr.vmem [resolvable:$true] %s1165
          %s1167 = sshll.u32 %s1163, 4
          %s1168 = int_to_ptr.hbm [resolvable:$true] %s1167
          %1170 = dma.vmem_to_hbm [thread:$0]  %s1166, 128, %s1168, %s1147
        $region108: #{tpu_custom_call.1} parent=91 // pred_fallthru
          _
        // Predicated region
        $region109: #{tpu_custom_call.1} parent=91 // pred_check
          %p1171 = pneg %p485
        $region110: #{tpu_custom_call.1} parent=91 // pred_check_branch
          %1173 = sbr.rel (%p1171) target = $region112
        $region111: #{tpu_custom_call.1} parent=91 // pred_region
          %1175 = vsyncadd %s1152, 0
          %s1176 = sadd.s32 %s47, %s46
          %s1177 = smul.addr %s1176, 8
          %s1178 = scalar_lea.hbm %s19, %s1177
          %s1179 = sshll.u32 %s1155, 4
          %s1180 = int_to_ptr.vmem [resolvable:$true] %s1179
          %s1181 = sshll.u32 %s1178, 4
          %s1182 = int_to_ptr.hbm [resolvable:$true] %s1181
          %1187 = dma.vmem_to_hbm [thread:$0]  %s1180, 256, %s1182, %s1152, 128, 256, 8
        $region112: #{tpu_custom_call.1} parent=91 // pred_fallthru
          _
      $region92: #{tpu_custom_call.1} parent=5 // pred_fallthru
        _
      %p1188 = scmp.le.s32.totalorder 2, %s37
      // Predicated region
      $region113: #{tpu_custom_call.1} parent=5 // pred_check
        %p1189 = pneg %p1188
      $region114: #{tpu_custom_call.1} parent=5 // pred_check_branch
        %1191 = sbr.rel (%p1189) target = $region116
      $region115: #{tpu_custom_call.1} parent=5 // pred_region
        %s1192 = ssub.s32 %s37, 2
        // Predicated region
        $region117: #{tpu_custom_call.1} parent=115 // pred_check
          %p1193 = pneg %p463
        $region118: #{tpu_custom_call.1} parent=115 // pred_check_branch
          %1195 = sbr.rel (%p1193) target = $region120
        $region119: #{tpu_custom_call.1} parent=115 // pred_region
          %s1196 = sand.u32 %s448, 1
          %s1197 = scalar_lea.sflag [#allocation8], %s1196
          %s1198 = sand.u32 %s448, 1
          %s1199 = smul.addr %s1198, 8
          %s1200 = scalar_lea.vmem [#allocation11], %s1199
          %1202 = dma.done %s1197, 128
        $region120: #{tpu_custom_call.1} parent=115 // pred_fallthru
          _
        // Predicated region
        $region121: #{tpu_custom_call.1} parent=115 // pred_check
          %p1203 = pneg %p491
        $region122: #{tpu_custom_call.1} parent=115 // pred_check_branch
          %1205 = sbr.rel (%p1203) target = $region124
        $region123: #{tpu_custom_call.1} parent=115 // pred_region
          %s1206 = sand.u32 %s476, 1
          %s1207 = scalar_lea.sflag [#allocation13], %s1206
          %s1208 = sand.u32 %s476, 1
          %s1209 = smul.addr %s1208, 16
          %s1210 = scalar_lea.vmem [#allocation12], %s1209
          %1212 = dma.done %s1207, 256
        $region124: #{tpu_custom_call.1} parent=115 // pred_fallthru
          _
      $region116: #{tpu_custom_call.1} parent=5 // pred_fallthru
        _
    $region6: #{tpu_custom_call.1} parent=1 // loop_footer
      %s41 = sadd.s32 1, %s37
    $region7: #{tpu_custom_call.1} parent=1 // loop_footer_branch
      %36 = sbr.rel target = $region3
    $region8: #{tpu_custom_call.1} parent=1 // loop_exit
      _
    %1213 = vsyncpa [#allocation7], 1
    %s1214 = scalar_lea.sflag [#allocation7], 1
    %1215 = vsyncpa %s1214, 1
    %1216 = vsyncpa [#allocation10], 1
    %1217 = vsyncpa [#allocation8], 1
    %s1218 = scalar_lea.sflag [#allocation8], 1
    %1219 = vsyncpa %s1218, 1
    %1220 = vsyncpa [#allocation13], 1
    %s1221 = scalar_lea.sflag [#allocation13], 1
    %1222 = vsyncpa %s1221, 1

</llo_original>
